<compile_context>
chip_gen: v7x
topology: tpu7x:2x2x1
jax: 0.10.0
libtpu: 0.0.40
codegen_flags: <defaults>
</compile_context>

<pallas_src>
import functools

import jax
import jax.numpy as jnp
from jax import lax
from jax.experimental import pallas as pl
from jax.experimental.pallas import tpu as pltpu

BLOCK_SIZE = 128   # tril buffer size / max sequence length
N_EMBD = 128       # C
LANE = 128         # TPU lane width; each Q/K/V weight group is padded to this many columns


def _two_tensorcores():
    """True on chips with 2 TensorCores (v7x); falls back to False (single-TC behaviour)."""
    try:
        kind = jax.devices()[0].device_kind.lower()
    except Exception:
        return False
    return ("v7" in kind) or ("tpu7" in kind)


def _head_kernel(x_ref, wqkv_ref, o_ref, *, batch_block, seq_len, head_size):
    bb, T, H = batch_block, seq_len, head_size
    C = x_ref.shape[-1]

    # Fused Q/K/V projection as a single (bb*T, C) x (C, 3*LANE) MXU matmul (M = bb*T),
    # f32 accumulation.  Leading-dim reshapes only touch dims above (sublane, lane).
    x2d = x_ref[...].reshape(bb * T, C)
    qkv = jnp.dot(x2d, wqkv_ref[...], preferred_element_type=jnp.float32)   # (bb*T, 3*LANE)
    qkv = qkv.reshape(bb, T, 3 * LANE)

    # Lane-aligned slices (offsets 0 / 128 / 256 -> no XLU rotates).  The zero-padded
    # columns of each group contribute nothing to the contractions below.
    q = qkv[:, :, 0:LANE].astype(jnp.bfloat16)            # 1/sqrt(C) already folded into Wq
    k = qkv[:, :, LANE:2 * LANE].astype(jnp.bfloat16)
    v = qkv[:, :, 2 * LANE:3 * LANE].astype(jnp.bfloat16)

    # Additive causal mask, built once per grid step and reused across the batch block.
    # Both int32 iotas are consumed here (dead before exp/e are materialized).
    row = lax.broadcasted_iota(jnp.int32, (T, T), 0)
    col = lax.broadcasted_iota(jnp.int32, (T, T), 1)
    neg = jnp.where(col <= row, jnp.float32(0.0), jnp.float32(-1e30))        # (T, T) f32

    # Attention scores: contract the (padded) feature axis directly (no explicit transpose).
    wei = jnp.einsum("btd,bsd->bts", q, k,
                     preferred_element_type=jnp.float32) + neg               # (bb, T, T) f32

    # Numerically stable softmax with DEFERRED normalization:
    # masked entries underflow to exactly 0 after the max-subtract + exp.
    m = jnp.max(wei, axis=-1, keepdims=True)
    e = jnp.exp(wei - m)
    s = jnp.sum(e, axis=-1, keepdims=True)                                   # (bb, T, 1)

    # dropout: identity (inference mode)

    acc = jnp.einsum("bts,bsd->btd", e.astype(jnp.bfloat16), v,
                     preferred_element_type=jnp.float32)                     # (bb, T, LANE) f32

    # Normalize only the narrow (bb, T, H) slice of the f32 accumulator (offset-0 slice,
    # no rotate); reciprocal goes to the EUP slot.
    out = acc[:, :, :H] * pl.reciprocal(s, approx=True)
    o_ref[...] = out.astype(o_ref.dtype)


def prepare_qkv_weights(wk, wq, wv):
    """One-time (parameter-load-time) prep: fuse Q/K/V into a lane-padded (C, 3*128) bf16
    matrix.  Each group is zero-padded to a 128-lane boundary so the in-kernel slices land at
    lane offsets 0/128/256 (no XLU rotates), and the 1/sqrt(C) attention-score scale is folded
    into the query weights.  wk/wq/wv are PyTorch nn.Linear weights of shape (head_size, C)."""
    H, C = wq.shape
    assert H <= LANE

    def pad_t(w):                                    # (H, C) -> (C, LANE), zero-padded lanes
        return jnp.pad(w.astype(jnp.float32).T, ((0, 0), (0, LANE - H)))

    scale = jnp.float32(C) ** -0.5
    wqkv = jnp.concatenate([pad_t(wq) * scale, pad_t(wk), pad_t(wv)], axis=1)   # (C, 3*LANE)
    return wqkv.astype(jnp.bfloat16)


@functools.partial(jax.jit, static_argnames=("head_size",))
def head_forward(x, wqkv, *, head_size):
    """x: (B, T, C) f32; wqkv: prepared (C, 3*128) bf16 weights from prepare_qkv_weights."""
    B, T, C = x.shape
    assert C == N_EMBD and T <= BLOCK_SIZE

    # v7x (2 TensorCores): one batch element per "parallel" grid step, one per core.
    # v5e/v6e (1 TensorCore): collapse the batch into a single grid step (no per-step
    # overhead, and the projection runs with M = B*T).
    bb = 1 if (_two_tensorcores() and B > 1) else B
    grid = (B // bb,)

    kernel = functools.partial(_head_kernel, batch_block=bb, seq_len=T, head_size=head_size)

    return pl.pallas_call(
        kernel,
        out_shape=jax.ShapeDtypeStruct((B, T, head_size), jnp.float32),
        grid_spec=pltpu.PrefetchScalarGridSpec(
            num_scalar_prefetch=0,
            grid=grid,
            in_specs=[
                pl.BlockSpec((bb, T, C), lambda b: (b, 0, 0)),
                # fused, lane-padded weights; resident across the whole grid
                pl.BlockSpec((C, 3 * LANE), lambda b: (0, 0)),
            ],
            out_specs=pl.BlockSpec((bb, T, head_size), lambda b: (b, 0, 0)),
        ),
        compiler_params=pltpu.CompilerParams(
            dimension_semantics=("parallel",),
        ),
    )(x.astype(jnp.bfloat16), wqkv)


def head_reference(x, wk, wq, wv):
    """Pure-JAX f32 reference mirroring the PyTorch forward (eval mode)."""
    B, T, C = x.shape
    k = x @ wk.T
    q = x @ wq.T
    v = x @ wv.T
    wei = (q @ jnp.swapaxes(k, -2, -1)) * (C ** -0.5)
    mask = jnp.tril(jnp.ones((T, T), dtype=bool))
    wei = jnp.where(mask, wei, -jnp.inf)
    wei = jax.nn.softmax(wei, axis=-1)
    return wei @ v


if __name__ == "__main__":
    # small shapes consistent with the module: B=2, T=block_size=128, C=n_embd=128
    B, T, C = 2, BLOCK_SIZE, N_EMBD
    head_size = 32

    key = jax.random.PRNGKey(0)
    kx, kk, kq, kv = jax.random.split(key, 4)

    x = jax.random.normal(kx, (B, T, C), dtype=jnp.float32)
    # deterministic parameter init (Linear(bias=False) weight shape: (head_size, n_embd))
    wk = jax.random.normal(kk, (head_size, C), dtype=jnp.float32) * 0.02
    wq = jax.random.normal(kq, (head_size, C), dtype=jnp.float32) * 0.02
    wv = jax.random.normal(kv, (head_size, C), dtype=jnp.float32) * 0.02

    # one-time parameter prep (hoisted out of the per-call path)
    wqkv = prepare_qkv_weights(wk, wq, wv)

    out = head_forward(x, wqkv, head_size=head_size)
    out = jax.block_until_ready(out)

    ref = head_reference(x, wk, wq, wv)
    assert out.shape == (B, T, head_size)
    # bf16 matmul inputs (f32 accumulation) + approx reciprocal -> relaxed tolerance vs f32 ref
    assert jnp.allclose(out, ref, atol=2e-2, rtol=2e-2), "mismatch vs. JAX reference"

    print("KERNEL_OK")
</pallas_src>

<mosaic_0001>
module attributes {stable_mosaic.version = 11 : i64} {
  func.func @_head_kernel(%arg0: i32, %arg1: memref<2x128x128xbf16, #tpu.memory_space<vmem>>, %arg2: memref<128x384xbf16, #tpu.memory_space<vmem>>, %arg3: memref<2x128x32xf32, #tpu.memory_space<vmem>>) attributes {dimension_semantics = [#tpu.dimension_semantics<parallel>], iteration_bounds = array<i64: 1>, scalar_prefetch = 0 : i64, scratch_operands = 0 : i64, tpu.core_type = #tpu.core_type<tc>, window_params = [{transform_indices = @transform_0, window_bounds = array<i64: 2, 128, 128>}, {pipeline_mode = #tpu.pipeline_mode<synchronous>, transform_indices = @transform_1, window_bounds = array<i64: 128, 384>}, {transform_indices = @transform_2, window_bounds = array<i64: 2, 128, 32>}]} {
    %c0 = arith.constant 0 : index
    %c0_0 = arith.constant 0 : index
    %c0_1 = arith.constant 0 : index
    %0 = vector.load %arg1[%c0, %c0_0, %c0_1] : memref<2x128x128xbf16, #tpu.memory_space<vmem>>, vector<2x128x128xbf16>
    %1 = vector.shape_cast %0 : vector<2x128x128xbf16> to vector<256x128xbf16>
    %c0_2 = arith.constant 0 : index
    %c0_3 = arith.constant 0 : index
    %2 = vector.load %arg2[%c0_2, %c0_3] : memref<128x384xbf16, #tpu.memory_space<vmem>>, vector<128x384xbf16>
    %cst = arith.constant dense<0.000000e+00> : vector<256x384xf32>
    %3 = tpu.matmul %1, %2, %cst {dimension_numbers = #tpu.dot_dimension_numbers<[1], [0], [0], [1], [0, 0, 1, 1], [], []>} : vector<256x128xbf16>, vector<128x384xbf16>, vector<256x384xf32> -> vector<256x384xf32>
    %4 = vector.shape_cast %3 : vector<256x384xf32> to vector<2x128x384xf32>
    %5 = vector.extract_strided_slice %4 {offsets = [0, 0, 0], sizes = [2, 128, 128], strides = [1, 1, 1]} : vector<2x128x384xf32> to vector<2x128x128xf32>
    %6 = arith.truncf %5 : vector<2x128x128xf32> to vector<2x128x128xbf16>
    %7 = vector.extract_strided_slice %4 {offsets = [0, 0, 128], sizes = [2, 128, 128], strides = [1, 1, 1]} : vector<2x128x384xf32> to vector<2x128x128xf32>
    %8 = arith.truncf %7 : vector<2x128x128xf32> to vector<2x128x128xbf16>
    %9 = vector.extract_strided_slice %4 {offsets = [0, 0, 256], sizes = [2, 128, 128], strides = [1, 1, 1]} : vector<2x128x384xf32> to vector<2x128x128xf32>
    %10 = arith.truncf %9 : vector<2x128x128xf32> to vector<2x128x128xbf16>
    %11 = tpu.iota {dimensions = array<i32: 0>} : vector<128x128xi32>
    %12 = tpu.iota {dimensions = array<i32: 1>} : vector<128x128xi32>
    %13 = arith.cmpi sle, %12, %11 : vector<128x128xi32>
    %cst_4 = arith.constant 0.000000e+00 : f32
    %cst_5 = arith.constant -1.000000e+30 : f32
    %14 = vector.broadcast %cst_4 : f32 to vector<128x128xf32>
    %15 = vector.broadcast %cst_5 : f32 to vector<128x128xf32>
    %16 = arith.select %13, %14, %15 : vector<128x128xi1>, vector<128x128xf32>
    "tpu.trace_start"() <{level = 10 : i32, message = "btd,bsd->bts"}> : () -> ()
    %cst_6 = arith.constant dense<0.000000e+00> : vector<2x128x128xf32>
    %17 = tpu.matmul %6, %8, %cst_6 {dimension_numbers = #tpu.dot_dimension_numbers<[2], [2], [1], [1], [0, 0, 0, 1, 1, 1], [0], [0]>} : vector<2x128x128xbf16>, vector<2x128x128xbf16>, vector<2x128x128xf32> -> vector<2x128x128xf32>
    "tpu.trace_stop"() : () -> ()
    %18 = vector.shape_cast %16 : vector<128x128xf32> to vector<1x128x128xf32>
    %19 = vector.broadcast %18 : vector<1x128x128xf32> to vector<2x128x128xf32>
    %20 = arith.addf %17, %19 : vector<2x128x128xf32>
    %cst_7 = arith.constant dense<0xFF800000> : vector<2x128xf32>
    %21 = vector.multi_reduction <maximumf>, %20, %cst_7 [2] : vector<2x128x128xf32> to vector<2x128xf32>
    %22 = vector.shape_cast %21 : vector<2x128xf32> to vector<2x128x1xf32>
    %23 = vector.broadcast %22 : vector<2x128x1xf32> to vector<2x128x128xf32>
    %24 = arith.subf %20, %23 : vector<2x128x128xf32>
    %25 = math.exp %24 : vector<2x128x128xf32>
    %cst_8 = arith.constant dense<0.000000e+00> : vector<2x128xf32>
    %26 = vector.multi_reduction <add>, %25, %cst_8 [2] : vector<2x128x128xf32> to vector<2x128xf32>
    %27 = vector.shape_cast %26 : vector<2x128xf32> to vector<2x128x1xf32>
    %28 = arith.truncf %25 : vector<2x128x128xf32> to vector<2x128x128xbf16>
    "tpu.trace_start"() <{level = 10 : i32, message = "bts,bsd->btd"}> : () -> ()
    %cst_9 = arith.constant dense<0.000000e+00> : vector<2x128x128xf32>
    %29 = tpu.matmul %28, %10, %cst_9 {dimension_numbers = #tpu.dot_dimension_numbers<[2], [1], [1], [2], [0, 0, 0, 1, 1, 2], [0], [0]>} : vector<2x128x128xbf16>, vector<2x128x128xbf16>, vector<2x128x128xf32> -> vector<2x128x128xf32>
    "tpu.trace_stop"() : () -> ()
    %30 = vector.extract_strided_slice %29 {offsets = [0, 0, 0], sizes = [2, 128, 32], strides = [1, 1, 1]} : vector<2x128x128xf32> to vector<2x128x32xf32>
    %31 = tpu.reciprocal %27 {approx = true} : vector<2x128x1xf32> -> vector<2x128x1xf32>
    %32 = vector.broadcast %31 : vector<2x128x1xf32> to vector<2x128x32xf32>
    %33 = arith.mulf %30, %32 : vector<2x128x32xf32>
    %c0_10 = arith.constant 0 : index
    %c0_11 = arith.constant 0 : index
    %c0_12 = arith.constant 0 : index
    %34 = vector.load %arg3[%c0_10, %c0_11, %c0_12] : memref<2x128x32xf32, #tpu.memory_space<vmem>>, vector<2x128x32xf32>
    tpu.vector_store %arg3[%c0_10, %c0_11, %c0_12], %33 {strides = array<i32>} : memref<2x128x32xf32, #tpu.memory_space<vmem>>, vector<2x128x32xf32>,
    return
  }
  func.func @transform_0(%arg0: i32) -> (i32, i32, i32) {
    %c0_i32 = arith.constant 0 : i32
    %c0_i32_0 = arith.constant 0 : i32
    %c0_i32_1 = arith.constant 0 : i32
    return %arg0, %c0_i32, %c0_i32_0 : i32, i32, i32
  }
  func.func @transform_1(%arg0: i32) -> (i32, i32) {
    %c0_i32 = arith.constant 0 : i32
    %c0_i32_0 = arith.constant 0 : i32
    %c0_i32_1 = arith.constant 0 : i32
    return %c0_i32, %c0_i32_0 : i32, i32
  }
  func.func @transform_2(%arg0: i32) -> (i32, i32, i32) {
    %c0_i32 = arith.constant 0 : i32
    %c0_i32_0 = arith.constant 0 : i32
    %c0_i32_1 = arith.constant 0 : i32
    return %arg0, %c0_i32, %c0_i32_0 : i32, i32, i32
  }
}

</mosaic_0001>

<llo_original>
// kernel: head_forward.1
$region0: #{head_forward.1}
  #allocation0 [shape = 'u32[]', space=smem, size = 0x4, offset = 0x4, fixed_abs, tag = 'smem constant byte address 0x4 - core index']
  #allocation1 [shape = 'u32[144,128]{1,0:T(1,128)}', space=vmem, size = 0x12000, scoped, tag = 'internal scratch']
  %s0 = inlined_call_operand.vmem [shape: bf16[2,128,128], index: 0, kind: input, shape index: {}]
  %s1 = inlined_call_operand.vmem [shape: bf16[128,384], index: 1, kind: input, shape index: {}]
  %s2 = inlined_call_operand.vmem [shape: f32[2,128,32], index: 2, kind: output, shape index: {}]
  %s3 = sld [smem:[#allocation0]]
  $region18: #{head_forward.1} parent=0
    _
  %s5 = ssub.s32 1, %s3
  %s6 = scalar_select 0, %s5, %s3
  // Predicated region
  $region2: #{head_forward.1} parent=0 // pred_check
    _
  $region3: #{head_forward.1} parent=0 // pred_check_branch
    %8 = sbr.rel (0) target = $region5
  $region4: #{head_forward.1} parent=0 // pred_region
    _
  $region5: #{head_forward.1} parent=0 // pred_fallthru
    _
  // Predicated region
  $region6: #{head_forward.1} parent=0 // pred_check
    _
  $region7: #{head_forward.1} parent=0 // pred_check_branch
    %10 = sbr.rel (0) target = $region9
  $region8: #{head_forward.1} parent=0 // pred_region
    _
  $region9: #{head_forward.1} parent=0 // pred_fallthru
    _
  %v12 = vld [vmem:[%s0] sm:$0xf]
  %v13 = vld [vmem:[%s0 + $0x4] sm:$0xf]
  %v14 = vld [vmem:[%s0 + $0x8] sm:$0xf]
  %v15 = vld [vmem:[%s0 + $0xc] sm:$0xf]
  %v16 = vld [vmem:[%s0 + $0x10] sm:$0xf]
  %v17 = vld [vmem:[%s0 + $0x14] sm:$0xf]
  %v18 = vld [vmem:[%s0 + $0x18] sm:$0xf]
  %v19 = vld [vmem:[%s0 + $0x1c] sm:$0xf]
  %v20 = vld [vmem:[%s0 + $0x20] sm:$0xf]
  %v21 = vld [vmem:[%s0 + $0x24] sm:$0xf]
  %v22 = vld [vmem:[%s0 + $0x28] sm:$0xf]
  %v23 = vld [vmem:[%s0 + $0x2c] sm:$0xf]
  %v24 = vld [vmem:[%s0 + $0x30] sm:$0xf]
  %v25 = vld [vmem:[%s0 + $0x34] sm:$0xf]
  %v26 = vld [vmem:[%s0 + $0x38] sm:$0xf]
  %v27 = vld [vmem:[%s0 + $0x3c] sm:$0xf]
  %v28 = vld [vmem:[%s0 + $0x40] sm:$0xf]
  %v29 = vld [vmem:[%s0 + $0x44] sm:$0xf]
  %v30 = vld [vmem:[%s0 + $0x48] sm:$0xf]
  %v31 = vld [vmem:[%s0 + $0x4c] sm:$0xf]
  %v32 = vld [vmem:[%s0 + $0x50] sm:$0xf]
  %v33 = vld [vmem:[%s0 + $0x54] sm:$0xf]
  %v34 = vld [vmem:[%s0 + $0x58] sm:$0xf]
  %v35 = vld [vmem:[%s0 + $0x5c] sm:$0xf]
  %v36 = vld [vmem:[%s0 + $0x60] sm:$0xf]
  %v37 = vld [vmem:[%s0 + $0x64] sm:$0xf]
  %v38 = vld [vmem:[%s0 + $0x68] sm:$0xf]
  %v39 = vld [vmem:[%s0 + $0x6c] sm:$0xf]
  %v40 = vld [vmem:[%s0 + $0x70] sm:$0xf]
  %v41 = vld [vmem:[%s0 + $0x74] sm:$0xf]
  %v42 = vld [vmem:[%s0 + $0x78] sm:$0xf]
  %v43 = vld [vmem:[%s0 + $0x7c] sm:$0xf]
  %v44 = vld [vmem:[%s1] sm:$0xff]
  %v45 = vld [vmem:[%s1 + $0x8] sm:$0xf]
  %v46 = vld [vmem:[%s1 + $0xc] sm:$0xff]
  %v47 = vld [vmem:[%s1 + $0x14] sm:$0xf]
  %v48 = vld [vmem:[%s1 + $0x18] sm:$0xff]
  %v49 = vld [vmem:[%s1 + $0x20] sm:$0xf]
  %v50 = vld [vmem:[%s1 + $0x24] sm:$0xff]
  %v51 = vld [vmem:[%s1 + $0x2c] sm:$0xf]
  %v52 = vld [vmem:[%s1 + $0x30] sm:$0xff]
  %v53 = vld [vmem:[%s1 + $0x38] sm:$0xf]
  %v54 = vld [vmem:[%s1 + $0x3c] sm:$0xff]
  %v55 = vld [vmem:[%s1 + $0x44] sm:$0xf]
  %v56 = vld [vmem:[%s1 + $0x48] sm:$0xff]
  %v57 = vld [vmem:[%s1 + $0x50] sm:$0xf]
  %v58 = vld [vmem:[%s1 + $0x54] sm:$0xff]
  %v59 = vld [vmem:[%s1 + $0x5c] sm:$0xf]
  %v60 = vld [vmem:[%s1 + $0x60] sm:$0xff]
  %v61 = vld [vmem:[%s1 + $0x68] sm:$0xf]
  %v62 = vld [vmem:[%s1 + $0x6c] sm:$0xff]
  %v63 = vld [vmem:[%s1 + $0x74] sm:$0xf]
  %v64 = vld [vmem:[%s1 + $0x78] sm:$0xff]
  %v65 = vld [vmem:[%s1 + $0x80] sm:$0xf]
  %v66 = vld [vmem:[%s1 + $0x84] sm:$0xff]
  %v67 = vld [vmem:[%s1 + $0x8c] sm:$0xf]
  %v68 = vld [vmem:[%s1 + $0x90] sm:$0xff]
  %v69 = vld [vmem:[%s1 + $0x98] sm:$0xf]
  %v70 = vld [vmem:[%s1 + $0x9c] sm:$0xff]
  %v71 = vld [vmem:[%s1 + $0xa4] sm:$0xf]
  %v72 = vld [vmem:[%s1 + $0xa8] sm:$0xff]
  %v73 = vld [vmem:[%s1 + $0xb0] sm:$0xf]
  %v74 = vld [vmem:[%s1 + $0xb4] sm:$0xff]
  %v75 = vld [vmem:[%s1 + $0xbc] sm:$0xf]
  %v108 = vunpack.c.l.b16 %v12
  %v109 = vunpack.c.l.b16 %v13
  %v110 = vunpack.c.l.b16 %v14
  %v111 = vunpack.c.l.b16 %v15
  %v112 = vunpack.c.l.b16 %v16
  %v113 = vunpack.c.l.b16 %v17
  %v114 = vunpack.c.l.b16 %v18
  %v115 = vunpack.c.l.b16 %v19
  %v116 = vunpack.c.l.b16 %v20
  %v117 = vunpack.c.l.b16 %v21
  %v118 = vunpack.c.l.b16 %v22
  %v119 = vunpack.c.l.b16 %v23
  %v120 = vunpack.c.l.b16 %v24
  %v121 = vunpack.c.l.b16 %v25
  %v122 = vunpack.c.l.b16 %v26
  %v123 = vunpack.c.l.b16 %v27
  %v124 = vunpack.c.l.b16 %v28
  %v125 = vunpack.c.l.b16 %v29
  %v126 = vunpack.c.l.b16 %v30
  %v127 = vunpack.c.l.b16 %v31
  %v128 = vunpack.c.l.b16 %v32
  %v129 = vunpack.c.l.b16 %v33
  %v130 = vunpack.c.l.b16 %v34
  %v131 = vunpack.c.l.b16 %v35
  %v132 = vunpack.c.l.b16 %v36
  %v133 = vunpack.c.l.b16 %v37
  %v134 = vunpack.c.l.b16 %v38
  %v135 = vunpack.c.l.b16 %v39
  %v136 = vunpack.c.l.b16 %v40
  %v137 = vunpack.c.l.b16 %v41
  %v138 = vunpack.c.l.b16 %v42
  %v139 = vunpack.c.l.b16 %v43
  %v140 = vpack.c.b16 %v109, %v108
  %v141 = vpack.c.b16 %v111, %v110
  %v142 = vpack.c.b16 %v113, %v112
  %v143 = vpack.c.b16 %v115, %v114
  %v144 = vpack.c.b16 %v117, %v116
  %v145 = vpack.c.b16 %v119, %v118
  %v146 = vpack.c.b16 %v121, %v120
  %v147 = vpack.c.b16 %v123, %v122
  %v148 = vpack.c.b16 %v125, %v124
  %v149 = vpack.c.b16 %v127, %v126
  %v150 = vpack.c.b16 %v129, %v128
  %v151 = vpack.c.b16 %v131, %v130
  %v152 = vpack.c.b16 %v133, %v132
  %v153 = vpack.c.b16 %v135, %v134
  %v154 = vpack.c.b16 %v137, %v136
  %v155 = vpack.c.b16 %v139, %v138
  %v204 = vunpack.c.l.b16 %v44
  %v205 = vunpack.c.h.b16 %v44
  %v206 = vunpack.c.l.b16 %v45
  %v207 = vunpack.c.l.b16 %v46
  %v208 = vunpack.c.h.b16 %v46
  %v209 = vunpack.c.l.b16 %v47
  %v210 = vunpack.c.l.b16 %v48
  %v211 = vunpack.c.h.b16 %v48
  %v212 = vunpack.c.l.b16 %v49
  %v213 = vunpack.c.l.b16 %v50
  %v214 = vunpack.c.h.b16 %v50
  %v215 = vunpack.c.l.b16 %v51
  %v216 = vunpack.c.l.b16 %v52
  %v217 = vunpack.c.h.b16 %v52
  %v218 = vunpack.c.l.b16 %v53
  %v219 = vunpack.c.l.b16 %v54
  %v220 = vunpack.c.h.b16 %v54
  %v221 = vunpack.c.l.b16 %v55
  %v222 = vunpack.c.l.b16 %v56
  %v223 = vunpack.c.h.b16 %v56
  %v224 = vunpack.c.l.b16 %v57
  %v225 = vunpack.c.l.b16 %v58
  %v226 = vunpack.c.h.b16 %v58
  %v227 = vunpack.c.l.b16 %v59
  %v228 = vunpack.c.l.b16 %v60
  %v229 = vunpack.c.h.b16 %v60
  %v230 = vunpack.c.l.b16 %v61
  %v231 = vunpack.c.l.b16 %v62
  %v232 = vunpack.c.h.b16 %v62
  %v233 = vunpack.c.l.b16 %v63
  %v234 = vunpack.c.l.b16 %v64
  %v235 = vunpack.c.h.b16 %v64
  %v236 = vunpack.c.l.b16 %v65
  %v237 = vunpack.c.l.b16 %v66
  %v238 = vunpack.c.h.b16 %v66
  %v239 = vunpack.c.l.b16 %v67
  %v240 = vunpack.c.l.b16 %v68
  %v241 = vunpack.c.h.b16 %v68
  %v242 = vunpack.c.l.b16 %v69
  %v243 = vunpack.c.l.b16 %v70
  %v244 = vunpack.c.h.b16 %v70
  %v245 = vunpack.c.l.b16 %v71
  %v246 = vunpack.c.l.b16 %v72
  %v247 = vunpack.c.h.b16 %v72
  %v248 = vunpack.c.l.b16 %v73
  %v249 = vunpack.c.l.b16 %v74
  %v250 = vunpack.c.h.b16 %v74
  %v251 = vunpack.c.l.b16 %v75
  %v252 = vpack.c.b16 %v207, %v204
  %v253 = vpack.c.b16 %v208, %v205
  %v254 = vpack.c.b16 %v209, %v206
  %v255 = vpack.c.b16 %v213, %v210
  %v256 = vpack.c.b16 %v214, %v211
  %v257 = vpack.c.b16 %v215, %v212
  %v258 = vpack.c.b16 %v219, %v216
  %v259 = vpack.c.b16 %v220, %v217
  %v260 = vpack.c.b16 %v221, %v218
  %v261 = vpack.c.b16 %v225, %v222
  %v262 = vpack.c.b16 %v226, %v223
  %v263 = vpack.c.b16 %v227, %v224
  %v264 = vpack.c.b16 %v231, %v228
  %v265 = vpack.c.b16 %v232, %v229
  %v266 = vpack.c.b16 %v233, %v230
  %v267 = vpack.c.b16 %v237, %v234
  %v268 = vpack.c.b16 %v238, %v235
  %v269 = vpack.c.b16 %v239, %v236
  %v270 = vpack.c.b16 %v243, %v240
  %v271 = vpack.c.b16 %v244, %v241
  %v272 = vpack.c.b16 %v245, %v242
  %v273 = vpack.c.b16 %v249, %v246
  %v274 = vpack.c.b16 %v250, %v247
  %v275 = vpack.c.b16 %v251, %v248
  %300 = vmatprep.subr.bf16.mxu0 %v253
  %301 = vmatpush1.bf16.msra.mxu0 %v252
  %302 = vmatprep.subr.bf16.mxu0 %v256
  %303 = vmatpush1.bf16.msra.mxu0 %v255
  %304 = vmatprep.subr.bf16.mxu0 %v259
  %305 = vmatpush1.bf16.msra.mxu0 %v258
  %306 = vmatprep.subr.bf16.mxu0 %v262
  %307 = vmatpush1.bf16.msra.mxu0 %v261
  %308 = vmatprep.subr.bf16.mxu0 %v265
  %309 = vmatpush1.bf16.msra.mxu0 %v264
  %310 = vmatprep.subr.bf16.mxu0 %v268
  %311 = vmatpush1.bf16.msra.mxu0 %v267
  %312 = vmatprep.subr.bf16.mxu0 %v271
  %313 = vmatpush1.bf16.msra.mxu0 %v270
  %314 = vmatprep.subr.bf16.mxu0 %v274
  %315 = vmatpush1.bf16.msra.mxu0 %v273
  %316 = vmatprep.subr.bf16.mxu0 0
  %317 = vmatpush1.bf16.msra.mxu0 0
  %318 = vmatprep.subr.bf16.mxu0 0
  %319 = vmatpush1.bf16.msra.mxu0 0
  %320 = vmatprep.subr.bf16.mxu0 0
  %321 = vmatpush1.bf16.msra.mxu0 0
  %322 = vmatprep.subr.bf16.mxu0 0
  %323 = vmatpush1.bf16.msra.mxu0 0
  %324 = vmatprep.subr.bf16.mxu0 0
  %325 = vmatpush1.bf16.msra.mxu0 0
  %326 = vmatprep.subr.bf16.mxu0 0
  %327 = vmatpush1.bf16.msra.mxu0 0
  %328 = vmatprep.subr.bf16.mxu0 0
  %329 = vmatpush1.bf16.msra.mxu0 0
  %330 = vmatprep.subr.bf16.mxu0 0
  %331 = vmatpush1.bf16.msra.mxu0 0
  %332 = vmatprep.mubr.bf16.mxu0 0
  %333 = vmatmul.mubr.bf16.gmra.mrb[0].mxu0 %v140
  %v334 = vpop.f32.mrb[0].mxu0
  %v335 = vadd.f32 0.0, %v334
  %v336 = vpop.f32.mrb[0].mxu0
  %v337 = vadd.f32 0.0, %v336
  %v338 = vpop.f32.mrb[0].mxu0
  %v339 = vadd.f32 0.0, %v338
  %v340 = vpop.f32.mrb[0].mxu0
  %v341 = vadd.f32 0.0, %v340
  %342 = vmatprep.mubr.bf16.mxu0 0
  %343 = vmatmul.mubr.bf16.gmra.mrb[0].mxu0 %v141
  %v344 = vpop.f32.mrb[0].mxu0
  %v345 = vadd.f32 0.0, %v344
  %v346 = vpop.f32.mrb[0].mxu0
  %v347 = vadd.f32 0.0, %v346
  %v348 = vpop.f32.mrb[0].mxu0
  %v349 = vadd.f32 0.0, %v348
  %v350 = vpop.f32.mrb[0].mxu0
  %v351 = vadd.f32 0.0, %v350
  %352 = vmatprep.mubr.bf16.mxu0 0
  %353 = vmatmul.mubr.bf16.gmra.mrb[0].mxu0 %v142
  %v354 = vpop.f32.mrb[0].mxu0
  %v355 = vadd.f32 0.0, %v354
  %v356 = vpop.f32.mrb[0].mxu0
  %v357 = vadd.f32 0.0, %v356
  %v358 = vpop.f32.mrb[0].mxu0
  %v359 = vadd.f32 0.0, %v358
  %v360 = vpop.f32.mrb[0].mxu0
  %v361 = vadd.f32 0.0, %v360
  %362 = vmatprep.mubr.bf16.mxu0 0
  %363 = vmatmul.mubr.bf16.gmra.mrb[0].mxu0 %v143
  %v364 = vpop.f32.mrb[0].mxu0
  %v365 = vadd.f32 0.0, %v364
  %v366 = vpop.f32.mrb[0].mxu0
  %v367 = vadd.f32 0.0, %v366
  %v368 = vpop.f32.mrb[0].mxu0
  %v369 = vadd.f32 0.0, %v368
  %v370 = vpop.f32.mrb[0].mxu0
  %v371 = vadd.f32 0.0, %v370
  %372 = vmatprep.mubr.bf16.mxu0 0
  %373 = vmatmul.mubr.bf16.gmra.mrb[0].mxu0 %v144
  %v374 = vpop.f32.mrb[0].mxu0
  %v375 = vadd.f32 0.0, %v374
  %v376 = vpop.f32.mrb[0].mxu0
  %v377 = vadd.f32 0.0, %v376
  %v378 = vpop.f32.mrb[0].mxu0
  %v379 = vadd.f32 0.0, %v378
  %v380 = vpop.f32.mrb[0].mxu0
  %v381 = vadd.f32 0.0, %v380
  %382 = vmatprep.mubr.bf16.mxu0 0
  %383 = vmatmul.mubr.bf16.gmra.mrb[0].mxu0 %v145
  %v384 = vpop.f32.mrb[0].mxu0
  %v385 = vadd.f32 0.0, %v384
  %v386 = vpop.f32.mrb[0].mxu0
  %v387 = vadd.f32 0.0, %v386
  %v388 = vpop.f32.mrb[0].mxu0
  %v389 = vadd.f32 0.0, %v388
  %v390 = vpop.f32.mrb[0].mxu0
  %v391 = vadd.f32 0.0, %v390
  %392 = vmatprep.mubr.bf16.mxu0 0
  %393 = vmatmul.mubr.bf16.gmra.mrb[0].mxu0 %v146
  %v394 = vpop.f32.mrb[0].mxu0
  %v395 = vadd.f32 0.0, %v394
  %v396 = vpop.f32.mrb[0].mxu0
  %v397 = vadd.f32 0.0, %v396
  %v398 = vpop.f32.mrb[0].mxu0
  %v399 = vadd.f32 0.0, %v398
  %v400 = vpop.f32.mrb[0].mxu0
  %v401 = vadd.f32 0.0, %v400
  %402 = vmatprep.mubr.bf16.mxu0 0
  %403 = vmatmul.mubr.bf16.gmra.mrb[0].mxu0 %v147
  %v404 = vpop.f32.mrb[0].mxu0
  %v405 = vadd.f32 0.0, %v404
  %v406 = vpop.f32.mrb[0].mxu0
  %v407 = vadd.f32 0.0, %v406
  %v408 = vpop.f32.mrb[0].mxu0
  %v409 = vadd.f32 0.0, %v408
  %v410 = vpop.f32.mrb[0].mxu0
  %v411 = vadd.f32 0.0, %v410
  %412 = vmatprep.mubr.bf16.mxu0 0
  %413 = vmatmul.mubr.bf16.gmra.mrb[0].mxu0 %v148
  %v414 = vpop.f32.mrb[0].mxu0
  %v415 = vadd.f32 0.0, %v414
  %v416 = vpop.f32.mrb[0].mxu0
  %v417 = vadd.f32 0.0, %v416
  %v418 = vpop.f32.mrb[0].mxu0
  %v419 = vadd.f32 0.0, %v418
  %v420 = vpop.f32.mrb[0].mxu0
  %v421 = vadd.f32 0.0, %v420
  %422 = vmatprep.mubr.bf16.mxu0 0
  %423 = vmatmul.mubr.bf16.gmra.mrb[0].mxu0 %v149
  %v424 = vpop.f32.mrb[0].mxu0
  %v425 = vadd.f32 0.0, %v424
  %v426 = vpop.f32.mrb[0].mxu0
  %v427 = vadd.f32 0.0, %v426
  %v428 = vpop.f32.mrb[0].mxu0
  %v429 = vadd.f32 0.0, %v428
  %v430 = vpop.f32.mrb[0].mxu0
  %v431 = vadd.f32 0.0, %v430
  %432 = vmatprep.mubr.bf16.mxu0 0
  %433 = vmatmul.mubr.bf16.gmra.mrb[0].mxu0 %v150
  %v434 = vpop.f32.mrb[0].mxu0
  %v435 = vadd.f32 0.0, %v434
  %v436 = vpop.f32.mrb[0].mxu0
  %v437 = vadd.f32 0.0, %v436
  %v438 = vpop.f32.mrb[0].mxu0
  %v439 = vadd.f32 0.0, %v438
  %v440 = vpop.f32.mrb[0].mxu0
  %v441 = vadd.f32 0.0, %v440
  %442 = vmatprep.mubr.bf16.mxu0 0
  %443 = vmatmul.mubr.bf16.gmra.mrb[0].mxu0 %v151
  %v444 = vpop.f32.mrb[0].mxu0
  %v445 = vadd.f32 0.0, %v444
  %v446 = vpop.f32.mrb[0].mxu0
  %v447 = vadd.f32 0.0, %v446
  %v448 = vpop.f32.mrb[0].mxu0
  %v449 = vadd.f32 0.0, %v448
  %v450 = vpop.f32.mrb[0].mxu0
  %v451 = vadd.f32 0.0, %v450
  %452 = vmatprep.mubr.bf16.mxu0 0
  %453 = vmatmul.mubr.bf16.gmra.mrb[0].mxu0 %v152
  %v454 = vpop.f32.mrb[0].mxu0
  %v455 = vadd.f32 0.0, %v454
  %v456 = vpop.f32.mrb[0].mxu0
  %v457 = vadd.f32 0.0, %v456
  %v458 = vpop.f32.mrb[0].mxu0
  %v459 = vadd.f32 0.0, %v458
  %v460 = vpop.f32.mrb[0].mxu0
  %v461 = vadd.f32 0.0, %v460
  %462 = vmatprep.mubr.bf16.mxu0 0
  %463 = vmatmul.mubr.bf16.gmra.mrb[0].mxu0 %v153
  %v464 = vpop.f32.mrb[0].mxu0
  %v465 = vadd.f32 0.0, %v464
  %v466 = vpop.f32.mrb[0].mxu0
  %v467 = vadd.f32 0.0, %v466
  %v468 = vpop.f32.mrb[0].mxu0
  %v469 = vadd.f32 0.0, %v468
  %v470 = vpop.f32.mrb[0].mxu0
  %v471 = vadd.f32 0.0, %v470
  %472 = vmatprep.mubr.bf16.mxu0 0
  %473 = vmatmul.mubr.bf16.gmra.mrb[0].mxu0 %v154
  %v474 = vpop.f32.mrb[0].mxu0
  %v475 = vadd.f32 0.0, %v474
  %v476 = vpop.f32.mrb[0].mxu0
  %v477 = vadd.f32 0.0, %v476
  %v478 = vpop.f32.mrb[0].mxu0
  %v479 = vadd.f32 0.0, %v478
  %v480 = vpop.f32.mrb[0].mxu0
  %v481 = vadd.f32 0.0, %v480
  %482 = vmatprep.mubr.bf16.mxu0 0
  %483 = vmatmul.mubr.bf16.gmra.mrb[0].mxu0 %v155
  %v484 = vpop.f32.mrb[0].mxu0
  %v485 = vadd.f32 0.0, %v484
  %v486 = vpop.f32.mrb[0].mxu0
  %v487 = vadd.f32 0.0, %v486
  %v488 = vpop.f32.mrb[0].mxu0
  %v489 = vadd.f32 0.0, %v488
  %v490 = vpop.f32.mrb[0].mxu0
  %v491 = vadd.f32 0.0, %v490
  %492 = vdwg.mxu0
  %493 = vmatprep.subr.bf16.mxu0 0
  %494 = vmatpush1.bf16.msra.mxu0 %v254
  %495 = vmatprep.subr.bf16.mxu0 0
  %496 = vmatpush1.bf16.msra.mxu0 %v257
  %497 = vmatprep.subr.bf16.mxu0 0
  %498 = vmatpush1.bf16.msra.mxu0 %v260
  %499 = vmatprep.subr.bf16.mxu0 0
  %500 = vmatpush1.bf16.msra.mxu0 %v263
  %501 = vmatprep.subr.bf16.mxu0 0
  %502 = vmatpush1.bf16.msra.mxu0 %v266
  %503 = vmatprep.subr.bf16.mxu0 0
  %504 = vmatpush1.bf16.msra.mxu0 %v269
  %505 = vmatprep.subr.bf16.mxu0 0
  %506 = vmatpush1.bf16.msra.mxu0 %v272
  %507 = vmatprep.subr.bf16.mxu0 0
  %508 = vmatpush1.bf16.msra.mxu0 %v275
  %509 = vmatprep.subr.bf16.mxu0 0
  %510 = vmatpush1.bf16.msra.mxu0 0
  %511 = vmatprep.subr.bf16.mxu0 0
  %512 = vmatpush1.bf16.msra.mxu0 0
  %513 = vmatprep.subr.bf16.mxu0 0
  %514 = vmatpush1.bf16.msra.mxu0 0
  %515 = vmatprep.subr.bf16.mxu0 0
  %516 = vmatpush1.bf16.msra.mxu0 0
  %517 = vmatprep.subr.bf16.mxu0 0
  %518 = vmatpush1.bf16.msra.mxu0 0
  %519 = vmatprep.subr.bf16.mxu0 0
  %520 = vmatpush1.bf16.msra.mxu0 0
  %521 = vmatprep.subr.bf16.mxu0 0
  %522 = vmatpush1.bf16.msra.mxu0 0
  %523 = vmatprep.subr.bf16.mxu0 0
  %524 = vmatpush1.bf16.msra.mxu0 0
  %525 = vmatprep.mubr.bf16.mxu0 0
  %526 = vmatmul.mubr.bf16.gmra.mrb[0].mxu0 %v140
  %v527 = vpop.f32.mrb[0].mxu0
  %v528 = vadd.f32 0.0, %v527
  %v529 = vpop.f32.mrb[0].mxu0
  %v530 = vpop.f32.mrb[0].mxu0
  %v531 = vadd.f32 0.0, %v530
  %v532 = vpop.f32.mrb[0].mxu0
  %533 = vmatprep.mubr.bf16.mxu0 0
  %534 = vmatmul.mubr.bf16.gmra.mrb[0].mxu0 %v141
  %v535 = vpop.f32.mrb[0].mxu0
  %v536 = vadd.f32 0.0, %v535
  %v537 = vpop.f32.mrb[0].mxu0
  %v538 = vpop.f32.mrb[0].mxu0
  %v539 = vadd.f32 0.0, %v538
  %v540 = vpop.f32.mrb[0].mxu0
  %541 = vmatprep.mubr.bf16.mxu0 0
  %542 = vmatmul.mubr.bf16.gmra.mrb[0].mxu0 %v142
  %v543 = vpop.f32.mrb[0].mxu0
  %v544 = vadd.f32 0.0, %v543
  %v545 = vpop.f32.mrb[0].mxu0
  %v546 = vpop.f32.mrb[0].mxu0
  %v547 = vadd.f32 0.0, %v546
  %v548 = vpop.f32.mrb[0].mxu0
  %549 = vmatprep.mubr.bf16.mxu0 0
  %550 = vmatmul.mubr.bf16.gmra.mrb[0].mxu0 %v143
  %v551 = vpop.f32.mrb[0].mxu0
  %v552 = vadd.f32 0.0, %v551
  %v553 = vpop.f32.mrb[0].mxu0
  %v554 = vpop.f32.mrb[0].mxu0
  %v555 = vadd.f32 0.0, %v554
  %v556 = vpop.f32.mrb[0].mxu0
  %557 = vmatprep.mubr.bf16.mxu0 0
  %558 = vmatmul.mubr.bf16.gmra.mrb[0].mxu0 %v144
  %v559 = vpop.f32.mrb[0].mxu0
  %v560 = vadd.f32 0.0, %v559
  %v561 = vpop.f32.mrb[0].mxu0
  %v562 = vpop.f32.mrb[0].mxu0
  %v563 = vadd.f32 0.0, %v562
  %v564 = vpop.f32.mrb[0].mxu0
  %565 = vmatprep.mubr.bf16.mxu0 0
  %566 = vmatmul.mubr.bf16.gmra.mrb[0].mxu0 %v145
  %v567 = vpop.f32.mrb[0].mxu0
  %v568 = vadd.f32 0.0, %v567
  %v569 = vpop.f32.mrb[0].mxu0
  %v570 = vpop.f32.mrb[0].mxu0
  %v571 = vadd.f32 0.0, %v570
  %v572 = vpop.f32.mrb[0].mxu0
  %573 = vmatprep.mubr.bf16.mxu0 0
  %574 = vmatmul.mubr.bf16.gmra.mrb[0].mxu0 %v146
  %v575 = vpop.f32.mrb[0].mxu0
  %v576 = vadd.f32 0.0, %v575
  %v577 = vpop.f32.mrb[0].mxu0
  %v578 = vpop.f32.mrb[0].mxu0
  %v579 = vadd.f32 0.0, %v578
  %v580 = vpop.f32.mrb[0].mxu0
  %581 = vmatprep.mubr.bf16.mxu0 0
  %582 = vmatmul.mubr.bf16.gmra.mrb[0].mxu0 %v147
  %v583 = vpop.f32.mrb[0].mxu0
  %v584 = vadd.f32 0.0, %v583
  %v585 = vpop.f32.mrb[0].mxu0
  %v586 = vpop.f32.mrb[0].mxu0
  %v587 = vadd.f32 0.0, %v586
  %v588 = vpop.f32.mrb[0].mxu0
  %589 = vmatprep.mubr.bf16.mxu0 0
  %590 = vmatmul.mubr.bf16.gmra.mrb[0].mxu0 %v148
  %v591 = vpop.f32.mrb[0].mxu0
  %v592 = vadd.f32 0.0, %v591
  %v593 = vpop.f32.mrb[0].mxu0
  %v594 = vpop.f32.mrb[0].mxu0
  %v595 = vadd.f32 0.0, %v594
  %v596 = vpop.f32.mrb[0].mxu0
  %597 = vmatprep.mubr.bf16.mxu0 0
  %598 = vmatmul.mubr.bf16.gmra.mrb[0].mxu0 %v149
  %v599 = vpop.f32.mrb[0].mxu0
  %v600 = vadd.f32 0.0, %v599
  %v601 = vpop.f32.mrb[0].mxu0
  %v602 = vpop.f32.mrb[0].mxu0
  %v603 = vadd.f32 0.0, %v602
  %v604 = vpop.f32.mrb[0].mxu0
  %605 = vmatprep.mubr.bf16.mxu0 0
  %606 = vmatmul.mubr.bf16.gmra.mrb[0].mxu0 %v150
  %v607 = vpop.f32.mrb[0].mxu0
  %v608 = vadd.f32 0.0, %v607
  %v609 = vpop.f32.mrb[0].mxu0
  %v610 = vpop.f32.mrb[0].mxu0
  %v611 = vadd.f32 0.0, %v610
  %v612 = vpop.f32.mrb[0].mxu0
  %613 = vmatprep.mubr.bf16.mxu0 0
  %614 = vmatmul.mubr.bf16.gmra.mrb[0].mxu0 %v151
  %v615 = vpop.f32.mrb[0].mxu0
  %v616 = vadd.f32 0.0, %v615
  %v617 = vpop.f32.mrb[0].mxu0
  %v618 = vpop.f32.mrb[0].mxu0
  %v619 = vadd.f32 0.0, %v618
  %v620 = vpop.f32.mrb[0].mxu0
  %621 = vmatprep.mubr.bf16.mxu0 0
  %622 = vmatmul.mubr.bf16.gmra.mrb[0].mxu0 %v152
  %v623 = vpop.f32.mrb[0].mxu0
  %v624 = vadd.f32 0.0, %v623
  %v625 = vpop.f32.mrb[0].mxu0
  %v626 = vpop.f32.mrb[0].mxu0
  %v627 = vadd.f32 0.0, %v626
  %v628 = vpop.f32.mrb[0].mxu0
  %629 = vmatprep.mubr.bf16.mxu0 0
  %630 = vmatmul.mubr.bf16.gmra.mrb[0].mxu0 %v153
  %v631 = vpop.f32.mrb[0].mxu0
  %v632 = vadd.f32 0.0, %v631
  %v633 = vpop.f32.mrb[0].mxu0
  %v634 = vpop.f32.mrb[0].mxu0
  %v635 = vadd.f32 0.0, %v634
  %v636 = vpop.f32.mrb[0].mxu0
  %637 = vmatprep.mubr.bf16.mxu0 0
  %638 = vmatmul.mubr.bf16.gmra.mrb[0].mxu0 %v154
  %v639 = vpop.f32.mrb[0].mxu0
  %v640 = vadd.f32 0.0, %v639
  %v641 = vpop.f32.mrb[0].mxu0
  %v642 = vpop.f32.mrb[0].mxu0
  %v643 = vadd.f32 0.0, %v642
  %v644 = vpop.f32.mrb[0].mxu0
  %645 = vmatprep.mubr.bf16.mxu0 0
  %646 = vmatmul.mubr.bf16.gmra.mrb[0].mxu0 %v155
  %v647 = vpop.f32.mrb[0].mxu0
  %v648 = vadd.f32 0.0, %v647
  %v649 = vpop.f32.mrb[0].mxu0
  %v650 = vpop.f32.mrb[0].mxu0
  %v651 = vadd.f32 0.0, %v650
  %v652 = vpop.f32.mrb[0].mxu0
  %653 = vdwg.mxu0
  %v654 = vpack.c.bf16 %v339, %v335
  %v655 = vpack.c.bf16 %v349, %v345
  %v656 = vpack.c.bf16 %v359, %v355
  %v657 = vpack.c.bf16 %v369, %v365
  %v658 = vpack.c.bf16 %v379, %v375
  %v659 = vpack.c.bf16 %v389, %v385
  %v660 = vpack.c.bf16 %v399, %v395
  %v661 = vpack.c.bf16 %v409, %v405
  %v662 = vpack.c.bf16 %v419, %v415
  %v663 = vpack.c.bf16 %v429, %v425
  %v664 = vpack.c.bf16 %v439, %v435
  %v665 = vpack.c.bf16 %v449, %v445
  %v666 = vpack.c.bf16 %v459, %v455
  %v667 = vpack.c.bf16 %v469, %v465
  %v668 = vpack.c.bf16 %v479, %v475
  %v669 = vpack.c.bf16 %v489, %v485
  %v670 = vpack.c.bf16 %v341, %v337
  %v671 = vpack.c.bf16 %v351, %v347
  %v672 = vpack.c.bf16 %v361, %v357
  %v673 = vpack.c.bf16 %v371, %v367
  %v674 = vpack.c.bf16 %v381, %v377
  %v675 = vpack.c.bf16 %v391, %v387
  %v676 = vpack.c.bf16 %v401, %v397
  %v677 = vpack.c.bf16 %v411, %v407
  %v678 = vpack.c.bf16 %v421, %v417
  %v679 = vpack.c.bf16 %v431, %v427
  %v680 = vpack.c.bf16 %v441, %v437
  %v681 = vpack.c.bf16 %v451, %v447
  %v682 = vpack.c.bf16 %v461, %v457
  %v683 = vpack.c.bf16 %v471, %v467
  %v684 = vpack.c.bf16 %v481, %v477
  %v685 = vpack.c.bf16 %v491, %v487
  %v686 = vpack.c.bf16 %v531, %v528
  %v687 = vpack.c.bf16 %v539, %v536
  %v688 = vpack.c.bf16 %v547, %v544
  %v689 = vpack.c.bf16 %v555, %v552
  %v690 = vpack.c.bf16 %v563, %v560
  %v691 = vpack.c.bf16 %v571, %v568
  %v692 = vpack.c.bf16 %v579, %v576
  %v693 = vpack.c.bf16 %v587, %v584
  %v694 = vpack.c.bf16 %v595, %v592
  %v695 = vpack.c.bf16 %v603, %v600
  %v696 = vpack.c.bf16 %v611, %v608
  %v697 = vpack.c.bf16 %v619, %v616
  %v698 = vpack.c.bf16 %v627, %v624
  %v699 = vpack.c.bf16 %v635, %v632
  %v700 = vpack.c.bf16 %v643, %v640
  %v701 = vpack.c.bf16 %v651, %v648
  %v702 = vlaneseq
  %v703 = vshrl.u32 %v702, 7
  %v704 = vadd.s32 %v703, 8
  %v705 = vadd.s32 %v703, 16
  %v706 = vadd.s32 %v703, 24
  %v707 = vadd.s32 %v703, 32
  %v708 = vadd.s32 %v703, 40
  %v709 = vadd.s32 %v703, 48
  %v710 = vadd.s32 %v703, 56
  %v711 = vadd.s32 %v703, 64
  %v712 = vadd.s32 %v703, 72
  %v713 = vadd.s32 %v703, 80
  %v714 = vadd.s32 %v703, 88
  %v715 = vadd.s32 %v703, 96
  %v716 = vadd.s32 %v703, 104
  %v717 = vadd.s32 %v703, 112
  %v718 = vadd.s32 %v703, 120
  %v719 = vlaneseq
  %v720 = vand.u32 %v719, 127
  %vm721 = vcmp.le.s32.totalorder %v720, %v703
  %vm722 = vcmp.le.s32.totalorder %v720, %v704
  %vm723 = vcmp.le.s32.totalorder %v720, %v705
  %vm724 = vcmp.le.s32.totalorder %v720, %v706
  %vm725 = vcmp.le.s32.totalorder %v720, %v707
  %vm726 = vcmp.le.s32.totalorder %v720, %v708
  %vm727 = vcmp.le.s32.totalorder %v720, %v709
  %vm728 = vcmp.le.s32.totalorder %v720, %v710
  %vm729 = vcmp.le.s32.totalorder %v720, %v711
  %vm730 = vcmp.le.s32.totalorder %v720, %v712
  %vm731 = vcmp.le.s32.totalorder %v720, %v713
  %vm732 = vcmp.le.s32.totalorder %v720, %v714
  %vm733 = vcmp.le.s32.totalorder %v720, %v715
  %vm734 = vcmp.le.s32.totalorder %v720, %v716
  %vm735 = vcmp.le.s32.totalorder %v720, %v717
  %vm736 = vcmp.le.s32.totalorder %v720, %v718
  %v737 = vsel %vm721, 0.0, -1e+30
  %v738 = vsel %vm722, 0.0, -1e+30
  %v739 = vsel %vm723, 0.0, -1e+30
  %v740 = vsel %vm724, 0.0, -1e+30
  %v741 = vsel %vm725, 0.0, -1e+30
  %v742 = vsel %vm726, 0.0, -1e+30
  %v743 = vsel %vm727, 0.0, -1e+30
  %v744 = vsel %vm728, 0.0, -1e+30
  %v745 = vsel %vm729, 0.0, -1e+30
  %v746 = vsel %vm730, 0.0, -1e+30
  %v747 = vsel %vm731, 0.0, -1e+30
  %v748 = vsel %vm732, 0.0, -1e+30
  %v749 = vsel %vm733, 0.0, -1e+30
  %v750 = vsel %vm734, 0.0, -1e+30
  %v751 = vsel %vm735, 0.0, -1e+30
  %v752 = vsel %vm736, 0.0, -1e+30
  %753 = vmatprep.subr.bf16.mxu0 0
  %754 = vmatpush1.bf16.xpose.msra.mxu0 %v670
  %755 = vmatprep.subr.bf16.mxu0 0
  %756 = vmatpush1.bf16.xpose.msra.mxu0 %v671
  %757 = vmatprep.subr.bf16.mxu0 0
  %758 = vmatpush1.bf16.xpose.msra.mxu0 %v672
  %759 = vmatprep.subr.bf16.mxu0 0
  %760 = vmatpush1.bf16.xpose.msra.mxu0 %v673
  %761 = vmatprep.subr.bf16.mxu0 0
  %762 = vmatpush1.bf16.xpose.msra.mxu0 %v674
  %763 = vmatprep.subr.bf16.mxu0 0
  %764 = vmatpush1.bf16.xpose.msra.mxu0 %v675
  %765 = vmatprep.subr.bf16.mxu0 0
  %766 = vmatpush1.bf16.xpose.msra.mxu0 %v676
  %767 = vmatprep.subr.bf16.mxu0 0
  %768 = vmatpush1.bf16.xpose.msra.mxu0 %v677
  %769 = vmatprep.subr.bf16.mxu0 0
  %770 = vmatpush1.bf16.xpose.msra.mxu0 0
  %771 = vmatprep.subr.bf16.mxu0 0
  %772 = vmatpush1.bf16.xpose.msra.mxu0 0
  %773 = vmatprep.subr.bf16.mxu0 0
  %774 = vmatpush1.bf16.xpose.msra.mxu0 0
  %775 = vmatprep.subr.bf16.mxu0 0
  %776 = vmatpush1.bf16.xpose.msra.mxu0 0
  %777 = vmatprep.subr.bf16.mxu0 0
  %778 = vmatpush1.bf16.xpose.msra.mxu0 0
  %779 = vmatprep.subr.bf16.mxu0 0
  %780 = vmatpush1.bf16.xpose.msra.mxu0 0
  %781 = vmatprep.subr.bf16.mxu0 0
  %782 = vmatpush1.bf16.xpose.msra.mxu0 0
  %783 = vmatprep.subr.bf16.mxu0 0
  %784 = vmatpush1.bf16.xpose.msra.mxu0 0
  %785 = vmatprep.mubr.bf16.mxu0 0
  %786 = vmatmul.mubr.bf16.gmra.mrb[0].mxu0 %v654
  %v787 = vpop.f32.mrb[0].mxu0
  %v788 = vadd.f32 %v737, %v787
  %v789 = vpop.f32.mrb[0].mxu0
  %v790 = vpop.f32.mrb[0].mxu0
  %v791 = vadd.f32 %v738, %v790
  %v792 = vpop.f32.mrb[0].mxu0
  %793 = vmatprep.mubr.bf16.mxu0 0
  %794 = vmatmul.mubr.bf16.gmra.mrb[0].mxu0 %v655
  %v795 = vpop.f32.mrb[0].mxu0
  %v796 = vadd.f32 %v739, %v795
  %v797 = vpop.f32.mrb[0].mxu0
  %v798 = vpop.f32.mrb[0].mxu0
  %v799 = vadd.f32 %v740, %v798
  %v800 = vpop.f32.mrb[0].mxu0
  %801 = vmatprep.mubr.bf16.mxu0 0
  %802 = vmatmul.mubr.bf16.gmra.mrb[0].mxu0 %v656
  %v803 = vpop.f32.mrb[0].mxu0
  %v804 = vadd.f32 %v741, %v803
  %v805 = vpop.f32.mrb[0].mxu0
  %v806 = vpop.f32.mrb[0].mxu0
  %v807 = vadd.f32 %v742, %v806
  %v808 = vpop.f32.mrb[0].mxu0
  %809 = vmatprep.mubr.bf16.mxu0 0
  %810 = vmatmul.mubr.bf16.gmra.mrb[0].mxu0 %v657
  %v811 = vpop.f32.mrb[0].mxu0
  %v812 = vadd.f32 %v743, %v811
  %v813 = vpop.f32.mrb[0].mxu0
  %v814 = vpop.f32.mrb[0].mxu0
  %v815 = vadd.f32 %v744, %v814
  %v816 = vpop.f32.mrb[0].mxu0
  %817 = vmatprep.mubr.bf16.mxu0 0
  %818 = vmatmul.mubr.bf16.gmra.mrb[0].mxu0 %v658
  %v819 = vpop.f32.mrb[0].mxu0
  %v820 = vadd.f32 %v745, %v819
  %v821 = vpop.f32.mrb[0].mxu0
  %v822 = vpop.f32.mrb[0].mxu0
  %v823 = vadd.f32 %v746, %v822
  %v824 = vpop.f32.mrb[0].mxu0
  %825 = vmatprep.mubr.bf16.mxu0 0
  %826 = vmatmul.mubr.bf16.gmra.mrb[0].mxu0 %v659
  %v827 = vpop.f32.mrb[0].mxu0
  %v828 = vadd.f32 %v747, %v827
  %v829 = vpop.f32.mrb[0].mxu0
  %v830 = vpop.f32.mrb[0].mxu0
  %v831 = vadd.f32 %v748, %v830
  %v832 = vpop.f32.mrb[0].mxu0
  %833 = vmatprep.mubr.bf16.mxu0 0
  %834 = vmatmul.mubr.bf16.gmra.mrb[0].mxu0 %v660
  %v835 = vpop.f32.mrb[0].mxu0
  %v836 = vadd.f32 %v749, %v835
  %v837 = vpop.f32.mrb[0].mxu0
  %v838 = vpop.f32.mrb[0].mxu0
  %v839 = vadd.f32 %v750, %v838
  %v840 = vpop.f32.mrb[0].mxu0
  %841 = vmatprep.mubr.bf16.mxu0 0
  %842 = vmatmul.mubr.bf16.gmra.mrb[0].mxu0 %v661
  %v843 = vpop.f32.mrb[0].mxu0
  %v844 = vadd.f32 %v751, %v843
  %v845 = vpop.f32.mrb[0].mxu0
  %v846 = vpop.f32.mrb[0].mxu0
  %v847 = vadd.f32 %v752, %v846
  %v848 = vpop.f32.mrb[0].mxu0
  %849 = vdwg.mxu0
  %850 = vmatprep.subr.bf16.mxu0 0
  %851 = vmatpush1.bf16.xpose.msra.mxu0 %v678
  %852 = vmatprep.subr.bf16.mxu0 0
  %853 = vmatpush1.bf16.xpose.msra.mxu0 %v679
  %854 = vmatprep.subr.bf16.mxu0 0
  %855 = vmatpush1.bf16.xpose.msra.mxu0 %v680
  %856 = vmatprep.subr.bf16.mxu0 0
  %857 = vmatpush1.bf16.xpose.msra.mxu0 %v681
  %858 = vmatprep.subr.bf16.mxu0 0
  %859 = vmatpush1.bf16.xpose.msra.mxu0 %v682
  %860 = vmatprep.subr.bf16.mxu0 0
  %861 = vmatpush1.bf16.xpose.msra.mxu0 %v683
  %862 = vmatprep.subr.bf16.mxu0 0
  %863 = vmatpush1.bf16.xpose.msra.mxu0 %v684
  %864 = vmatprep.subr.bf16.mxu0 0
  %865 = vmatpush1.bf16.xpose.msra.mxu0 %v685
  %866 = vmatprep.subr.bf16.mxu0 0
  %867 = vmatpush1.bf16.xpose.msra.mxu0 0
  %868 = vmatprep.subr.bf16.mxu0 0
  %869 = vmatpush1.bf16.xpose.msra.mxu0 0
  %870 = vmatprep.subr.bf16.mxu0 0
  %871 = vmatpush1.bf16.xpose.msra.mxu0 0
  %872 = vmatprep.subr.bf16.mxu0 0
  %873 = vmatpush1.bf16.xpose.msra.mxu0 0
  %874 = vmatprep.subr.bf16.mxu0 0
  %875 = vmatpush1.bf16.xpose.msra.mxu0 0
  %876 = vmatprep.subr.bf16.mxu0 0
  %877 = vmatpush1.bf16.xpose.msra.mxu0 0
  %878 = vmatprep.subr.bf16.mxu0 0
  %879 = vmatpush1.bf16.xpose.msra.mxu0 0
  %880 = vmatprep.subr.bf16.mxu0 0
  %881 = vmatpush1.bf16.xpose.msra.mxu0 0
  %882 = vmatprep.mubr.bf16.mxu0 0
  %883 = vmatmul.mubr.bf16.gmra.mrb[0].mxu0 %v662
  %v884 = vpop.f32.mrb[0].mxu0
  %v885 = vadd.f32 %v737, %v884
  %v886 = vpop.f32.mrb[0].mxu0
  %v887 = vpop.f32.mrb[0].mxu0
  %v888 = vadd.f32 %v738, %v887
  %v889 = vpop.f32.mrb[0].mxu0
  %890 = vmatprep.mubr.bf16.mxu0 0
  %891 = vmatmul.mubr.bf16.gmra.mrb[0].mxu0 %v663
  %v892 = vpop.f32.mrb[0].mxu0
  %v893 = vadd.f32 %v739, %v892
  %v894 = vpop.f32.mrb[0].mxu0
  %v895 = vpop.f32.mrb[0].mxu0
  %v896 = vadd.f32 %v740, %v895
  %v897 = vpop.f32.mrb[0].mxu0
  %898 = vmatprep.mubr.bf16.mxu0 0
  %899 = vmatmul.mubr.bf16.gmra.mrb[0].mxu0 %v664
  %v900 = vpop.f32.mrb[0].mxu0
  %v901 = vadd.f32 %v741, %v900
  %v902 = vpop.f32.mrb[0].mxu0
  %v903 = vpop.f32.mrb[0].mxu0
  %v904 = vadd.f32 %v742, %v903
  %v905 = vpop.f32.mrb[0].mxu0
  %906 = vmatprep.mubr.bf16.mxu0 0
  %907 = vmatmul.mubr.bf16.gmra.mrb[0].mxu0 %v665
  %v908 = vpop.f32.mrb[0].mxu0
  %v909 = vadd.f32 %v743, %v908
  %v910 = vpop.f32.mrb[0].mxu0
  %v911 = vpop.f32.mrb[0].mxu0
  %v912 = vadd.f32 %v744, %v911
  %v913 = vpop.f32.mrb[0].mxu0
  %914 = vmatprep.mubr.bf16.mxu0 0
  %915 = vmatmul.mubr.bf16.gmra.mrb[0].mxu0 %v666
  %v916 = vpop.f32.mrb[0].mxu0
  %v917 = vadd.f32 %v745, %v916
  %v918 = vpop.f32.mrb[0].mxu0
  %v919 = vpop.f32.mrb[0].mxu0
  %v920 = vadd.f32 %v746, %v919
  %v921 = vpop.f32.mrb[0].mxu0
  %922 = vmatprep.mubr.bf16.mxu0 0
  %923 = vmatmul.mubr.bf16.gmra.mrb[0].mxu0 %v667
  %v924 = vpop.f32.mrb[0].mxu0
  %v925 = vadd.f32 %v747, %v924
  %v926 = vpop.f32.mrb[0].mxu0
  %v927 = vpop.f32.mrb[0].mxu0
  %v928 = vadd.f32 %v748, %v927
  %v929 = vpop.f32.mrb[0].mxu0
  %930 = vmatprep.mubr.bf16.mxu0 0
  %931 = vmatmul.mubr.bf16.gmra.mrb[0].mxu0 %v668
  %v932 = vpop.f32.mrb[0].mxu0
  %v933 = vadd.f32 %v749, %v932
  %v934 = vpop.f32.mrb[0].mxu0
  %v935 = vpop.f32.mrb[0].mxu0
  %v936 = vadd.f32 %v750, %v935
  %v937 = vpop.f32.mrb[0].mxu0
  %938 = vmatprep.mubr.bf16.mxu0 0
  %939 = vmatmul.mubr.bf16.gmra.mrb[0].mxu0 %v669
  %v940 = vpop.f32.mrb[0].mxu0
  %v941 = vadd.f32 %v751, %v940
  %v942 = vpop.f32.mrb[0].mxu0
  %v943 = vpop.f32.mrb[0].mxu0
  %v944 = vadd.f32 %v752, %v943
  %v945 = vpop.f32.mrb[0].mxu0
  %946 = vdwg.mxu0
  %947 = vmax.xlane.f32.xlu0 %v788
  %v948 = vpop.xlane.xlu0 %947
  %949 = vmax.xlane.f32.xlu0 %v791
  %v950 = vpop.xlane.xlu0 %949
  %951 = vmax.xlane.f32.xlu0 %v796
  %v952 = vpop.xlane.xlu0 %951
  %953 = vmax.xlane.f32.xlu0 %v799
  %v954 = vpop.xlane.xlu0 %953
  %955 = vmax.xlane.f32.xlu0 %v804
  %v956 = vpop.xlane.xlu0 %955
  %957 = vmax.xlane.f32.xlu0 %v807
  %v958 = vpop.xlane.xlu0 %957
  %959 = vmax.xlane.f32.xlu0 %v812
  %v960 = vpop.xlane.xlu0 %959
  %961 = vmax.xlane.f32.xlu0 %v815
  %v962 = vpop.xlane.xlu0 %961
  %963 = vmax.xlane.f32.xlu0 %v820
  %v964 = vpop.xlane.xlu0 %963
  %965 = vmax.xlane.f32.xlu0 %v823
  %v966 = vpop.xlane.xlu0 %965
  %967 = vmax.xlane.f32.xlu0 %v828
  %v968 = vpop.xlane.xlu0 %967
  %969 = vmax.xlane.f32.xlu0 %v831
  %v970 = vpop.xlane.xlu0 %969
  %971 = vmax.xlane.f32.xlu0 %v836
  %v972 = vpop.xlane.xlu0 %971
  %973 = vmax.xlane.f32.xlu0 %v839
  %v974 = vpop.xlane.xlu0 %973
  %975 = vmax.xlane.f32.xlu0 %v844
  %v976 = vpop.xlane.xlu0 %975
  %977 = vmax.xlane.f32.xlu0 %v847
  %v978 = vpop.xlane.xlu0 %977
  %979 = vmax.xlane.f32.xlu0 %v885
  %v980 = vpop.xlane.xlu0 %979
  %981 = vmax.xlane.f32.xlu0 %v888
  %v982 = vpop.xlane.xlu0 %981
  %983 = vmax.xlane.f32.xlu0 %v893
  %v984 = vpop.xlane.xlu0 %983
  %985 = vmax.xlane.f32.xlu0 %v896
  %v986 = vpop.xlane.xlu0 %985
  %987 = vmax.xlane.f32.xlu0 %v901
  %v988 = vpop.xlane.xlu0 %987
  %989 = vmax.xlane.f32.xlu0 %v904
  %v990 = vpop.xlane.xlu0 %989
  %991 = vmax.xlane.f32.xlu0 %v909
  %v992 = vpop.xlane.xlu0 %991
  %993 = vmax.xlane.f32.xlu0 %v912
  %v994 = vpop.xlane.xlu0 %993
  %995 = vmax.xlane.f32.xlu0 %v917
  %v996 = vpop.xlane.xlu0 %995
  %997 = vmax.xlane.f32.xlu0 %v920
  %v998 = vpop.xlane.xlu0 %997
  %999 = vmax.xlane.f32.xlu0 %v925
  %v1000 = vpop.xlane.xlu0 %999
  %1001 = vmax.xlane.f32.xlu0 %v928
  %v1002 = vpop.xlane.xlu0 %1001
  %1003 = vmax.xlane.f32.xlu0 %v933
  %v1004 = vpop.xlane.xlu0 %1003
  %1005 = vmax.xlane.f32.xlu0 %v936
  %v1006 = vpop.xlane.xlu0 %1005
  %1007 = vmax.xlane.f32.xlu0 %v941
  %v1008 = vpop.xlane.xlu0 %1007
  %1009 = vmax.xlane.f32.xlu0 %v944
  %v1010 = vpop.xlane.xlu0 %1009
  %v1011 = vsub.f32 %v788, %v948
  %v1012 = vsub.f32 %v791, %v950
  %v1013 = vsub.f32 %v796, %v952
  %v1014 = vsub.f32 %v799, %v954
  %v1015 = vsub.f32 %v804, %v956
  %v1016 = vsub.f32 %v807, %v958
  %v1017 = vsub.f32 %v812, %v960
  %v1018 = vsub.f32 %v815, %v962
  %v1019 = vsub.f32 %v820, %v964
  %v1020 = vsub.f32 %v823, %v966
  %v1021 = vsub.f32 %v828, %v968
  %v1022 = vsub.f32 %v831, %v970
  %v1023 = vsub.f32 %v836, %v972
  %v1024 = vsub.f32 %v839, %v974
  %v1025 = vsub.f32 %v844, %v976
  %v1026 = vsub.f32 %v847, %v978
  %v1027 = vsub.f32 %v885, %v980
  %v1028 = vsub.f32 %v888, %v982
  %v1029 = vsub.f32 %v893, %v984
  %v1030 = vsub.f32 %v896, %v986
  %v1031 = vsub.f32 %v901, %v988
  %v1032 = vsub.f32 %v904, %v990
  %v1033 = vsub.f32 %v909, %v992
  %v1034 = vsub.f32 %v912, %v994
  %v1035 = vsub.f32 %v917, %v996
  %v1036 = vsub.f32 %v920, %v998
  %v1037 = vsub.f32 %v925, %v1000
  %v1038 = vsub.f32 %v928, %v1002
  %v1039 = vsub.f32 %v933, %v1004
  %v1040 = vsub.f32 %v936, %v1006
  %v1041 = vsub.f32 %v941, %v1008
  %v1042 = vsub.f32 %v944, %v1010
  %v1043 = vmul.f32 %v1011, 1.442695
  %v1044 = vpow.pop %v1043
  %v1045 = vmul.f32 %v1012, 1.442695
  %v1046 = vpow.pop %v1045
  %v1047 = vmul.f32 %v1013, 1.442695
  %v1048 = vpow.pop %v1047
  %v1049 = vmul.f32 %v1014, 1.442695
  %v1050 = vpow.pop %v1049
  %v1051 = vmul.f32 %v1015, 1.442695
  %v1052 = vpow.pop %v1051
  %v1053 = vmul.f32 %v1016, 1.442695
  %v1054 = vpow.pop %v1053
  %v1055 = vmul.f32 %v1017, 1.442695
  %v1056 = vpow.pop %v1055
  %v1057 = vmul.f32 %v1018, 1.442695
  %v1058 = vpow.pop %v1057
  %v1059 = vmul.f32 %v1019, 1.442695
  %v1060 = vpow.pop %v1059
  %v1061 = vmul.f32 %v1020, 1.442695
  %v1062 = vpow.pop %v1061
  %v1063 = vmul.f32 %v1021, 1.442695
  %v1064 = vpow.pop %v1063
  %v1065 = vmul.f32 %v1022, 1.442695
  %v1066 = vpow.pop %v1065
  %v1067 = vmul.f32 %v1023, 1.442695
  %v1068 = vpow.pop %v1067
  %v1069 = vmul.f32 %v1024, 1.442695
  %v1070 = vpow.pop %v1069
  %v1071 = vmul.f32 %v1025, 1.442695
  %v1072 = vpow.pop %v1071
  %v1073 = vmul.f32 %v1026, 1.442695
  %v1074 = vpow.pop %v1073
  %v1075 = vmul.f32 %v1027, 1.442695
  %v1076 = vpow.pop %v1075
  %v1077 = vmul.f32 %v1028, 1.442695
  %v1078 = vpow.pop %v1077
  %v1079 = vmul.f32 %v1029, 1.442695
  %v1080 = vpow.pop %v1079
  %v1081 = vmul.f32 %v1030, 1.442695
  %v1082 = vpow.pop %v1081
  %v1083 = vmul.f32 %v1031, 1.442695
  %v1084 = vpow.pop %v1083
  %v1085 = vmul.f32 %v1032, 1.442695
  %v1086 = vpow.pop %v1085
  %v1087 = vmul.f32 %v1033, 1.442695
  %v1088 = vpow.pop %v1087
  %v1089 = vmul.f32 %v1034, 1.442695
  %v1090 = vpow.pop %v1089
  %v1091 = vmul.f32 %v1035, 1.442695
  %v1092 = vpow.pop %v1091
  %v1093 = vmul.f32 %v1036, 1.442695
  %v1094 = vpow.pop %v1093
  %v1095 = vmul.f32 %v1037, 1.442695
  %v1096 = vpow.pop %v1095
  %v1097 = vmul.f32 %v1038, 1.442695
  %v1098 = vpow.pop %v1097
  %v1099 = vmul.f32 %v1039, 1.442695
  %v1100 = vpow.pop %v1099
  %v1101 = vmul.f32 %v1040, 1.442695
  %v1102 = vpow.pop %v1101
  %v1103 = vmul.f32 %v1041, 1.442695
  %v1104 = vpow.pop %v1103
  %v1105 = vmul.f32 %v1042, 1.442695
  %v1106 = vpow.pop %v1105
  %1107 = vadd.xlane.f32.xlu0 %v1044
  %v1108 = vpop.xlane.xlu0 %1107
  %1109 = vadd.xlane.f32.xlu0 %v1046
  %v1110 = vpop.xlane.xlu0 %1109
  %1111 = vadd.xlane.f32.xlu0 %v1048
  %v1112 = vpop.xlane.xlu0 %1111
  %1113 = vadd.xlane.f32.xlu0 %v1050
  %v1114 = vpop.xlane.xlu0 %1113
  %1115 = vadd.xlane.f32.xlu0 %v1052
  %v1116 = vpop.xlane.xlu0 %1115
  %1117 = vadd.xlane.f32.xlu0 %v1054
  %v1118 = vpop.xlane.xlu0 %1117
  %1119 = vadd.xlane.f32.xlu0 %v1056
  %v1120 = vpop.xlane.xlu0 %1119
  %1121 = vadd.xlane.f32.xlu0 %v1058
  %v1122 = vpop.xlane.xlu0 %1121
  %1123 = vadd.xlane.f32.xlu0 %v1060
  %v1124 = vpop.xlane.xlu0 %1123
  %1125 = vadd.xlane.f32.xlu0 %v1062
  %v1126 = vpop.xlane.xlu0 %1125
  %1127 = vadd.xlane.f32.xlu0 %v1064
  %v1128 = vpop.xlane.xlu0 %1127
  %1129 = vadd.xlane.f32.xlu0 %v1066
  %v1130 = vpop.xlane.xlu0 %1129
  %1131 = vadd.xlane.f32.xlu0 %v1068
  %v1132 = vpop.xlane.xlu0 %1131
  %1133 = vadd.xlane.f32.xlu0 %v1070
  %v1134 = vpop.xlane.xlu0 %1133
  %1135 = vadd.xlane.f32.xlu0 %v1072
  %v1136 = vpop.xlane.xlu0 %1135
  %1137 = vadd.xlane.f32.xlu0 %v1074
  %v1138 = vpop.xlane.xlu0 %1137
  %1139 = vadd.xlane.f32.xlu0 %v1076
  %v1140 = vpop.xlane.xlu0 %1139
  %1141 = vadd.xlane.f32.xlu0 %v1078
  %v1142 = vpop.xlane.xlu0 %1141
  %1143 = vadd.xlane.f32.xlu0 %v1080
  %v1144 = vpop.xlane.xlu0 %1143
  %1145 = vadd.xlane.f32.xlu0 %v1082
  %v1146 = vpop.xlane.xlu0 %1145
  %1147 = vadd.xlane.f32.xlu0 %v1084
  %v1148 = vpop.xlane.xlu0 %1147
  %1149 = vadd.xlane.f32.xlu0 %v1086
  %v1150 = vpop.xlane.xlu0 %1149
  %1151 = vadd.xlane.f32.xlu0 %v1088
  %v1152 = vpop.xlane.xlu0 %1151
  %1153 = vadd.xlane.f32.xlu0 %v1090
  %v1154 = vpop.xlane.xlu0 %1153
  %1155 = vadd.xlane.f32.xlu0 %v1092
  %v1156 = vpop.xlane.xlu0 %1155
  %1157 = vadd.xlane.f32.xlu0 %v1094
  %v1158 = vpop.xlane.xlu0 %1157
  %1159 = vadd.xlane.f32.xlu0 %v1096
  %v1160 = vpop.xlane.xlu0 %1159
  %1161 = vadd.xlane.f32.xlu0 %v1098
  %v1162 = vpop.xlane.xlu0 %1161
  %1163 = vadd.xlane.f32.xlu0 %v1100
  %v1164 = vpop.xlane.xlu0 %1163
  %1165 = vadd.xlane.f32.xlu0 %v1102
  %v1166 = vpop.xlane.xlu0 %1165
  %1167 = vadd.xlane.f32.xlu0 %v1104
  %v1168 = vpop.xlane.xlu0 %1167
  %1169 = vadd.xlane.f32.xlu0 %v1106
  %v1170 = vpop.xlane.xlu0 %1169
  %v1171 = vpack.c.bf16 %v1046, %v1044
  %v1172 = vpack.c.bf16 %v1050, %v1048
  %v1173 = vpack.c.bf16 %v1054, %v1052
  %v1174 = vpack.c.bf16 %v1058, %v1056
  %v1175 = vpack.c.bf16 %v1062, %v1060
  %v1176 = vpack.c.bf16 %v1066, %v1064
  %v1177 = vpack.c.bf16 %v1070, %v1068
  %v1178 = vpack.c.bf16 %v1074, %v1072
  %v1179 = vpack.c.bf16 %v1078, %v1076
  %v1180 = vpack.c.bf16 %v1082, %v1080
  %v1181 = vpack.c.bf16 %v1086, %v1084
  %v1182 = vpack.c.bf16 %v1090, %v1088
  %v1183 = vpack.c.bf16 %v1094, %v1092
  %v1184 = vpack.c.bf16 %v1098, %v1096
  %v1185 = vpack.c.bf16 %v1102, %v1100
  %v1186 = vpack.c.bf16 %v1106, %v1104
  %1187 = vmatprep.subr.bf16.mxu0 0
  %1188 = vmatpush1.bf16.msra.mxu0 %v686
  %1189 = vmatprep.subr.bf16.mxu0 0
  %1190 = vmatpush1.bf16.msra.mxu0 %v687
  %1191 = vmatprep.subr.bf16.mxu0 0
  %1192 = vmatpush1.bf16.msra.mxu0 %v688
  %1193 = vmatprep.subr.bf16.mxu0 0
  %1194 = vmatpush1.bf16.msra.mxu0 %v689
  %1195 = vmatprep.subr.bf16.mxu0 0
  %1196 = vmatpush1.bf16.msra.mxu0 %v690
  %1197 = vmatprep.subr.bf16.mxu0 0
  %1198 = vmatpush1.bf16.msra.mxu0 %v691
  %1199 = vmatprep.subr.bf16.mxu0 0
  %1200 = vmatpush1.bf16.msra.mxu0 %v692
  %1201 = vmatprep.subr.bf16.mxu0 0
  %1202 = vmatpush1.bf16.msra.mxu0 %v693
  %1203 = vmatprep.subr.bf16.mxu0 0
  %1204 = vmatpush1.bf16.msra.mxu0 0
  %1205 = vmatprep.subr.bf16.mxu0 0
  %1206 = vmatpush1.bf16.msra.mxu0 0
  %1207 = vmatprep.subr.bf16.mxu0 0
  %1208 = vmatpush1.bf16.msra.mxu0 0
  %1209 = vmatprep.subr.bf16.mxu0 0
  %1210 = vmatpush1.bf16.msra.mxu0 0
  %1211 = vmatprep.subr.bf16.mxu0 0
  %1212 = vmatpush1.bf16.msra.mxu0 0
  %1213 = vmatprep.subr.bf16.mxu0 0
  %1214 = vmatpush1.bf16.msra.mxu0 0
  %1215 = vmatprep.subr.bf16.mxu0 0
  %1216 = vmatpush1.bf16.msra.mxu0 0
  %1217 = vmatprep.subr.bf16.mxu0 0
  %1218 = vmatpush1.bf16.msra.mxu0 0
  %1219 = vmatprep.mubr.bf16.mxu0 0
  %1220 = vmatmul.mubr.bf16.gmra.mrb[0].mxu0 %v1171
  %v1221 = vpop.f32.mrb[0].mxu0
  %v1222 = vadd.f32 0.0, %v1221
  %v1223 = vpop.f32.mrb[0].mxu0
  %v1224 = vpop.f32.mrb[0].mxu0
  %v1225 = vadd.f32 0.0, %v1224
  %v1226 = vpop.f32.mrb[0].mxu0
  %1227 = vmatprep.mubr.bf16.mxu0 0
  %1228 = vmatmul.mubr.bf16.gmra.mrb[0].mxu0 %v1172
  %v1229 = vpop.f32.mrb[0].mxu0
  %v1230 = vadd.f32 0.0, %v1229
  %v1231 = vpop.f32.mrb[0].mxu0
  %v1232 = vpop.f32.mrb[0].mxu0
  %v1233 = vadd.f32 0.0, %v1232
  %v1234 = vpop.f32.mrb[0].mxu0
  %1235 = vmatprep.mubr.bf16.mxu0 0
  %1236 = vmatmul.mubr.bf16.gmra.mrb[0].mxu0 %v1173
  %v1237 = vpop.f32.mrb[0].mxu0
  %v1238 = vadd.f32 0.0, %v1237
  %v1239 = vpop.f32.mrb[0].mxu0
  %v1240 = vpop.f32.mrb[0].mxu0
  %v1241 = vadd.f32 0.0, %v1240
  %v1242 = vpop.f32.mrb[0].mxu0
  %1243 = vmatprep.mubr.bf16.mxu0 0
  %1244 = vmatmul.mubr.bf16.gmra.mrb[0].mxu0 %v1174
  %v1245 = vpop.f32.mrb[0].mxu0
  %v1246 = vadd.f32 0.0, %v1245
  %v1247 = vpop.f32.mrb[0].mxu0
  %v1248 = vpop.f32.mrb[0].mxu0
  %v1249 = vadd.f32 0.0, %v1248
  %v1250 = vpop.f32.mrb[0].mxu0
  %1251 = vmatprep.mubr.bf16.mxu0 0
  %1252 = vmatmul.mubr.bf16.gmra.mrb[0].mxu0 %v1175
  %v1253 = vpop.f32.mrb[0].mxu0
  %v1254 = vadd.f32 0.0, %v1253
  %v1255 = vpop.f32.mrb[0].mxu0
  %v1256 = vpop.f32.mrb[0].mxu0
  %v1257 = vadd.f32 0.0, %v1256
  %v1258 = vpop.f32.mrb[0].mxu0
  %1259 = vmatprep.mubr.bf16.mxu0 0
  %1260 = vmatmul.mubr.bf16.gmra.mrb[0].mxu0 %v1176
  %v1261 = vpop.f32.mrb[0].mxu0
  %v1262 = vadd.f32 0.0, %v1261
  %v1263 = vpop.f32.mrb[0].mxu0
  %v1264 = vpop.f32.mrb[0].mxu0
  %v1265 = vadd.f32 0.0, %v1264
  %v1266 = vpop.f32.mrb[0].mxu0
  %1267 = vmatprep.mubr.bf16.mxu0 0
  %1268 = vmatmul.mubr.bf16.gmra.mrb[0].mxu0 %v1177
  %v1269 = vpop.f32.mrb[0].mxu0
  %v1270 = vadd.f32 0.0, %v1269
  %v1271 = vpop.f32.mrb[0].mxu0
  %v1272 = vpop.f32.mrb[0].mxu0
  %v1273 = vadd.f32 0.0, %v1272
  %v1274 = vpop.f32.mrb[0].mxu0
  %1275 = vmatprep.mubr.bf16.mxu0 0
  %1276 = vmatmul.mubr.bf16.gmra.mrb[0].mxu0 %v1178
  %v1277 = vpop.f32.mrb[0].mxu0
  %v1278 = vadd.f32 0.0, %v1277
  %v1279 = vpop.f32.mrb[0].mxu0
  %v1280 = vpop.f32.mrb[0].mxu0
  %v1281 = vadd.f32 0.0, %v1280
  %v1282 = vpop.f32.mrb[0].mxu0
  %1283 = vdwg.mxu0
  %1284 = vmatprep.subr.bf16.mxu0 0
  %1285 = vmatpush1.bf16.msra.mxu0 %v694
  %1286 = vmatprep.subr.bf16.mxu0 0
  %1287 = vmatpush1.bf16.msra.mxu0 %v695
  %1288 = vmatprep.subr.bf16.mxu0 0
  %1289 = vmatpush1.bf16.msra.mxu0 %v696
  %1290 = vmatprep.subr.bf16.mxu0 0
  %1291 = vmatpush1.bf16.msra.mxu0 %v697
  %1292 = vmatprep.subr.bf16.mxu0 0
  %1293 = vmatpush1.bf16.msra.mxu0 %v698
  %1294 = vmatprep.subr.bf16.mxu0 0
  %1295 = vmatpush1.bf16.msra.mxu0 %v699
  %1296 = vmatprep.subr.bf16.mxu0 0
  %1297 = vmatpush1.bf16.msra.mxu0 %v700
  %1298 = vmatprep.subr.bf16.mxu0 0
  %1299 = vmatpush1.bf16.msra.mxu0 %v701
  %1300 = vmatprep.subr.bf16.mxu0 0
  %1301 = vmatpush1.bf16.msra.mxu0 0
  %1302 = vmatprep.subr.bf16.mxu0 0
  %1303 = vmatpush1.bf16.msra.mxu0 0
  %1304 = vmatprep.subr.bf16.mxu0 0
  %1305 = vmatpush1.bf16.msra.mxu0 0
  %1306 = vmatprep.subr.bf16.mxu0 0
  %1307 = vmatpush1.bf16.msra.mxu0 0
  %1308 = vmatprep.subr.bf16.mxu0 0
  %1309 = vmatpush1.bf16.msra.mxu0 0
  %1310 = vmatprep.subr.bf16.mxu0 0
  %1311 = vmatpush1.bf16.msra.mxu0 0
  %1312 = vmatprep.subr.bf16.mxu0 0
  %1313 = vmatpush1.bf16.msra.mxu0 0
  %1314 = vmatprep.subr.bf16.mxu0 0
  %1315 = vmatpush1.bf16.msra.mxu0 0
  %1316 = vmatprep.mubr.bf16.mxu0 0
  %1317 = vmatmul.mubr.bf16.gmra.mrb[0].mxu0 %v1179
  %v1318 = vpop.f32.mrb[0].mxu0
  %v1319 = vadd.f32 0.0, %v1318
  %v1320 = vpop.f32.mrb[0].mxu0
  %v1321 = vpop.f32.mrb[0].mxu0
  %v1322 = vadd.f32 0.0, %v1321
  %v1323 = vpop.f32.mrb[0].mxu0
  %1324 = vmatprep.mubr.bf16.mxu0 0
  %1325 = vmatmul.mubr.bf16.gmra.mrb[0].mxu0 %v1180
  %v1326 = vpop.f32.mrb[0].mxu0
  %v1327 = vadd.f32 0.0, %v1326
  %v1328 = vpop.f32.mrb[0].mxu0
  %v1329 = vpop.f32.mrb[0].mxu0
  %v1330 = vadd.f32 0.0, %v1329
  %v1331 = vpop.f32.mrb[0].mxu0
  %1332 = vmatprep.mubr.bf16.mxu0 0
  %1333 = vmatmul.mubr.bf16.gmra.mrb[0].mxu0 %v1181
  %v1334 = vpop.f32.mrb[0].mxu0
  %v1335 = vadd.f32 0.0, %v1334
  %v1336 = vpop.f32.mrb[0].mxu0
  %v1337 = vpop.f32.mrb[0].mxu0
  %v1338 = vadd.f32 0.0, %v1337
  %v1339 = vpop.f32.mrb[0].mxu0
  %1340 = vmatprep.mubr.bf16.mxu0 0
  %1341 = vmatmul.mubr.bf16.gmra.mrb[0].mxu0 %v1182
  %v1342 = vpop.f32.mrb[0].mxu0
  %v1343 = vadd.f32 0.0, %v1342
  %v1344 = vpop.f32.mrb[0].mxu0
  %v1345 = vpop.f32.mrb[0].mxu0
  %v1346 = vadd.f32 0.0, %v1345
  %v1347 = vpop.f32.mrb[0].mxu0
  %1348 = vmatprep.mubr.bf16.mxu0 0
  %1349 = vmatmul.mubr.bf16.gmra.mrb[0].mxu0 %v1183
  %v1350 = vpop.f32.mrb[0].mxu0
  %v1351 = vadd.f32 0.0, %v1350
  %v1352 = vpop.f32.mrb[0].mxu0
  %v1353 = vpop.f32.mrb[0].mxu0
  %v1354 = vadd.f32 0.0, %v1353
  %v1355 = vpop.f32.mrb[0].mxu0
  %1356 = vmatprep.mubr.bf16.mxu0 0
  %1357 = vmatmul.mubr.bf16.gmra.mrb[0].mxu0 %v1184
  %v1358 = vpop.f32.mrb[0].mxu0
  %v1359 = vadd.f32 0.0, %v1358
  %v1360 = vpop.f32.mrb[0].mxu0
  %v1361 = vpop.f32.mrb[0].mxu0
  %v1362 = vadd.f32 0.0, %v1361
  %v1363 = vpop.f32.mrb[0].mxu0
  %1364 = vmatprep.mubr.bf16.mxu0 0
  %1365 = vmatmul.mubr.bf16.gmra.mrb[0].mxu0 %v1185
  %v1366 = vpop.f32.mrb[0].mxu0
  %v1367 = vadd.f32 0.0, %v1366
  %v1368 = vpop.f32.mrb[0].mxu0
  %v1369 = vpop.f32.mrb[0].mxu0
  %v1370 = vadd.f32 0.0, %v1369
  %v1371 = vpop.f32.mrb[0].mxu0
  %1372 = vmatprep.mubr.bf16.mxu0 0
  %1373 = vmatmul.mubr.bf16.gmra.mrb[0].mxu0 %v1186
  %v1374 = vpop.f32.mrb[0].mxu0
  %v1375 = vadd.f32 0.0, %v1374
  %v1376 = vpop.f32.mrb[0].mxu0
  %v1377 = vpop.f32.mrb[0].mxu0
  %v1378 = vadd.f32 0.0, %v1377
  %v1379 = vpop.f32.mrb[0].mxu0
  %1380 = vdwg.mxu0
  %v1381 = vrcp.pop %v1108
  %v1382 = vrcp.pop %v1110
  %v1383 = vrcp.pop %v1112
  %v1384 = vrcp.pop %v1114
  %v1385 = vrcp.pop %v1116
  %v1386 = vrcp.pop %v1118
  %v1387 = vrcp.pop %v1120
  %v1388 = vrcp.pop %v1122
  %v1389 = vrcp.pop %v1124
  %v1390 = vrcp.pop %v1126
  %v1391 = vrcp.pop %v1128
  %v1392 = vrcp.pop %v1130
  %v1393 = vrcp.pop %v1132
  %v1394 = vrcp.pop %v1134
  %v1395 = vrcp.pop %v1136
  %v1396 = vrcp.pop %v1138
  %v1397 = vrcp.pop %v1140
  %v1398 = vrcp.pop %v1142
  %v1399 = vrcp.pop %v1144
  %v1400 = vrcp.pop %v1146
  %v1401 = vrcp.pop %v1148
  %v1402 = vrcp.pop %v1150
  %v1403 = vrcp.pop %v1152
  %v1404 = vrcp.pop %v1154
  %v1405 = vrcp.pop %v1156
  %v1406 = vrcp.pop %v1158
  %v1407 = vrcp.pop %v1160
  %v1408 = vrcp.pop %v1162
  %v1409 = vrcp.pop %v1164
  %v1410 = vrcp.pop %v1166
  %v1411 = vrcp.pop %v1168
  %v1412 = vrcp.pop %v1170
  %v1413 = vmul.f32 %v1222, %v1381
  %v1414 = vmul.f32 %v1225, %v1382
  %v1415 = vmul.f32 %v1230, %v1383
  %v1416 = vmul.f32 %v1233, %v1384
  %v1417 = vmul.f32 %v1238, %v1385
  %v1418 = vmul.f32 %v1241, %v1386
  %v1419 = vmul.f32 %v1246, %v1387
  %v1420 = vmul.f32 %v1249, %v1388
  %v1421 = vmul.f32 %v1254, %v1389
  %v1422 = vmul.f32 %v1257, %v1390
  %v1423 = vmul.f32 %v1262, %v1391
  %v1424 = vmul.f32 %v1265, %v1392
  %v1425 = vmul.f32 %v1270, %v1393
  %v1426 = vmul.f32 %v1273, %v1394
  %v1427 = vmul.f32 %v1278, %v1395
  %v1428 = vmul.f32 %v1281, %v1396
  %v1429 = vmul.f32 %v1319, %v1397
  %v1430 = vmul.f32 %v1322, %v1398
  %v1431 = vmul.f32 %v1327, %v1399
  %v1432 = vmul.f32 %v1330, %v1400
  %v1433 = vmul.f32 %v1335, %v1401
  %v1434 = vmul.f32 %v1338, %v1402
  %v1435 = vmul.f32 %v1343, %v1403
  %v1436 = vmul.f32 %v1346, %v1404
  %v1437 = vmul.f32 %v1351, %v1405
  %v1438 = vmul.f32 %v1354, %v1406
  %v1439 = vmul.f32 %v1359, %v1407
  %v1440 = vmul.f32 %v1362, %v1408
  %v1441 = vmul.f32 %v1367, %v1409
  %v1442 = vmul.f32 %v1370, %v1410
  %v1443 = vmul.f32 %v1375, %v1411
  %v1444 = vmul.f32 %v1378, %v1412
  %vm1445 = vcmask 261120
  %1446 = vst.msk [vmem:[%s2] sm:$0xff] %vm1445, %v1413
  %1447 = vst.msk [vmem:[%s2 + $0x8] sm:$0xff] %vm1445, %v1414
  %1448 = vst.msk [vmem:[%s2 + $0x10] sm:$0xff] %vm1445, %v1415
  %1449 = vst.msk [vmem:[%s2 + $0x18] sm:$0xff] %vm1445, %v1416
  %1450 = vst.msk [vmem:[%s2 + $0x20] sm:$0xff] %vm1445, %v1417
  %1451 = vst.msk [vmem:[%s2 + $0x28] sm:$0xff] %vm1445, %v1418
  %1452 = vst.msk [vmem:[%s2 + $0x30] sm:$0xff] %vm1445, %v1419
  %1453 = vst.msk [vmem:[%s2 + $0x38] sm:$0xff] %vm1445, %v1420
  %1454 = vst.msk [vmem:[%s2 + $0x40] sm:$0xff] %vm1445, %v1421
  %1455 = vst.msk [vmem:[%s2 + $0x48] sm:$0xff] %vm1445, %v1422
  %1456 = vst.msk [vmem:[%s2 + $0x50] sm:$0xff] %vm1445, %v1423
  %1457 = vst.msk [vmem:[%s2 + $0x58] sm:$0xff] %vm1445, %v1424
  %1458 = vst.msk [vmem:[%s2 + $0x60] sm:$0xff] %vm1445, %v1425
  %1459 = vst.msk [vmem:[%s2 + $0x68] sm:$0xff] %vm1445, %v1426
  %1460 = vst.msk [vmem:[%s2 + $0x70] sm:$0xff] %vm1445, %v1427
  %1461 = vst.msk [vmem:[%s2 + $0x78] sm:$0xff] %vm1445, %v1428
  %1462 = vst.msk [vmem:[%s2 + $0x80] sm:$0xff] %vm1445, %v1429
  %1463 = vst.msk [vmem:[%s2 + $0x88] sm:$0xff] %vm1445, %v1430
  %1464 = vst.msk [vmem:[%s2 + $0x90] sm:$0xff] %vm1445, %v1431
  %1465 = vst.msk [vmem:[%s2 + $0x98] sm:$0xff] %vm1445, %v1432
  %1466 = vst.msk [vmem:[%s2 + $0xa0] sm:$0xff] %vm1445, %v1433
  %1467 = vst.msk [vmem:[%s2 + $0xa8] sm:$0xff] %vm1445, %v1434
  %1468 = vst.msk [vmem:[%s2 + $0xb0] sm:$0xff] %vm1445, %v1435
  %1469 = vst.msk [vmem:[%s2 + $0xb8] sm:$0xff] %vm1445, %v1436
  %1470 = vst.msk [vmem:[%s2 + $0xc0] sm:$0xff] %vm1445, %v1437
  %1471 = vst.msk [vmem:[%s2 + $0xc8] sm:$0xff] %vm1445, %v1438
  %1472 = vst.msk [vmem:[%s2 + $0xd0] sm:$0xff] %vm1445, %v1439
  %1473 = vst.msk [vmem:[%s2 + $0xd8] sm:$0xff] %vm1445, %v1440
  %1474 = vst.msk [vmem:[%s2 + $0xe0] sm:$0xff] %vm1445, %v1441
  %1475 = vst.msk [vmem:[%s2 + $0xe8] sm:$0xff] %vm1445, %v1442
  %1476 = vst.msk [vmem:[%s2 + $0xf0] sm:$0xff] %vm1445, %v1443
  %1477 = vst.msk [vmem:[%s2 + $0xf8] sm:$0xff] %vm1445, %v1444
  // Predicated region
  $region10: #{head_forward.1} parent=0 // pred_check
    _
  $region11: #{head_forward.1} parent=0 // pred_check_branch
    %1479 = sbr.rel (0) target = $region13
  $region12: #{head_forward.1} parent=0 // pred_region
    _
  $region13: #{head_forward.1} parent=0 // pred_fallthru
    _
  // Predicated region
  $region14: #{head_forward.1} parent=0 // pred_check
    _
  $region15: #{head_forward.1} parent=0 // pred_check_branch
    %1481 = sbr.rel (0) target = $region17
  $region16: #{head_forward.1} parent=0 // pred_region
    _
  $region17: #{head_forward.1} parent=0 // pred_fallthru
    _

</llo_original>
